<compile_context>
chip_gen: v5e
topology: v5e:2x2
jax: 0.10.0
libtpu: 0.0.40
codegen_flags: <defaults>
</compile_context>

<pallas_src>
import numpy as np

import jax
import jax.numpy as jnp
from jax.experimental import pallas as pl
from jax.experimental.pallas import tpu as pltpu

EPS = 1e-5  # torch.nn.InstanceNorm2d default eps (affine=False, biased var)


def _in_relu(x):
    """InstanceNorm (no affine, biased var) + ReLU for a [C, spatial] slab."""
    mean = jnp.mean(x, axis=-1, keepdims=True)
    var = jnp.mean((x - mean) ** 2, axis=-1, keepdims=True)
    return jnp.maximum((x - mean) * jax.lax.rsqrt(var + EPS), 0.0)


def _build_selectors(H, W, stride):
    """Constant 0/1 matrices implementing the strided sampling.

    s_res[s, p]          = 1  iff flat source s == (ho*stride)*W + wo*stride
    s_im2col[s, k*P + p] = 1  iff flat source s is the reflect-padded input of
                              output position p for 3x3 tap k = ky*3 + kx.
    """
    Hout = (H - 1) // stride + 1
    Wout = (W - 1) // stride + 1
    P = Hout * Wout

    def refl(i, n):
        if i < 0:
            return -i
        if i >= n:
            return 2 * (n - 1) - i
        return i

    s_res = np.zeros((H * W, P), np.float32)
    s_im2col = np.zeros((H * W, 9 * P), np.float32)
    for ho in range(Hout):
        for wo in range(Wout):
            p = ho * Wout + wo
            s_res[(ho * stride) * W + wo * stride, p] = 1.0
            for ky in range(3):
                for kx in range(3):
                    k = ky * 3 + kx
                    src = (refl(ho * stride - 1 + ky, H) * W
                           + refl(wo * stride - 1 + kx, W))
                    s_im2col[src, k * P + p] = 1.0
    return jnp.asarray(s_res), jnp.asarray(s_im2col)


def _make_kernel(P, g, R):
    """Kernel factory.  g rows of the packed output hold g output channels."""

    def kernel(x_ref, sres_ref, sim_ref, w1_ref, b1_ref, w2_ref, b2_ref,
               w3_ref, b3_ref, wr_ref, br_ref, out_ref):
        f32 = jnp.float32
        x = x_ref[...].astype(f32)                                   # [Cin, HW]

        # ---- residual path: 1x1 conv with stride (gather via matmul) -------
        xs = jnp.dot(x, sres_ref[...], preferred_element_type=f32)   # [Cin, P]
        res = jnp.dot(wr_ref[...], xs,
                      preferred_element_type=f32) + br_ref[...]      # [Cout, P]

        # ---- IN -> ReLU -> conv_1 (1x1) ------------------------------------
        h = _in_relu(x)
        h = jnp.dot(w1_ref[...], h,
                    preferred_element_type=f32) + b1_ref[...]        # [Cb, HW]

        # ---- IN -> ReLU -> conv_2 (3x3 reflect pad, stride) via im2col -----
        h = _in_relu(h)
        pat = jnp.dot(h, sim_ref[...], preferred_element_type=f32)   # [Cb, 9P]
        pat = jnp.concatenate(
            [pat[:, k * P:(k + 1) * P] for k in range(9)], axis=0)   # [9Cb, P]
        h = jnp.dot(w2_ref[...], pat,
                    preferred_element_type=f32) + b2_ref[...]        # [Cb, P]

        # ---- IN -> ReLU -> conv_3 (1x1) + residual -------------------------
        h = _in_relu(h)
        y = (jnp.dot(w3_ref[...], h, preferred_element_type=f32)
             + b3_ref[...] + res)                                    # [Cout, P]

        # ---- lane-dense output slab ----------------------------------------
        if g > 1:
            # rows were pre-permuted in the wrapper so this concat flattens
            # back to (cout, ho, wo) order.
            y = jnp.concatenate(
                [y[j * R:(j + 1) * R, :] for j in range(g)], axis=1)  # [R, g*P]
        out_ref[...] = y.astype(out_ref.dtype)

    return kernel


def downsample_residual_block(x_nchw, params, stride):
    """x_nchw: [N, Cin, H, W]  ->  [N, 4*Cb, Hout, Wout]  (NCHW, like PyTorch)."""
    N, Cin, H, W = x_nchw.shape
    assert H >= 2 and W >= 2, "reflect padding needs H, W >= 2"
    Cb = params["w1"].shape[0]
    Cout = 4 * Cb
    Hout = (H - 1) // stride + 1
    Wout = (W - 1) // stride + 1
    HW, P = H * W, Hout * Wout

    # ---- lane-dense output packing factor ---------------------------------
    if P % 128 == 0:
        g = 1                                   # already lane-dense
    elif 128 % P == 0 and Cout % (128 // P) == 0:
        g = 128 // P                            # pack g channels per slab row
    else:
        g = 1  # TODO(synk): awkward spatial sizes fall back to masked stores
    R = Cout // g
    perm = (np.arange(Cout).reshape(R, g).T.reshape(-1)
            if g > 1 else np.arange(Cout))

    s_res, s_im = _build_selectors(H, W, stride)

    # ---- repack weights (tiny, one-time, outside the kernel) --------------
    f32 = jnp.float32
    w1 = params["w1"].astype(f32)                                   # [Cb, Cin]
    b1 = params["b1"].reshape(Cb, 1).astype(f32)
    # conv_2 weight [Cb, Cb, 3, 3] -> [cout, (ky*3+kx)*Cb + cin] = [Cb, 9*Cb]
    w2 = params["w2"].transpose(0, 2, 3, 1).reshape(Cb, 9 * Cb).astype(f32)
    b2 = params["b2"].reshape(Cb, 1).astype(f32)
    w3 = params["w3"][perm].astype(f32)                             # [Cout, Cb]
    b3 = params["b3"][perm].reshape(Cout, 1).astype(f32)
    wr = params["wr"][perm].astype(f32)                             # [Cout, Cin]
    br = params["br"][perm].reshape(Cout, 1).astype(f32)

    x = x_nchw.reshape(N, Cin, HW)     # free reshape, stays channel-major

    kernel = _make_kernel(P, g, R)

    grid_spec = pltpu.PrefetchScalarGridSpec(
        num_scalar_prefetch=0,
        grid=(N,),
        in_specs=[
            pl.BlockSpec((None, Cin, HW), lambda n: (n, 0, 0)),     # x
            pl.BlockSpec((HW, P), lambda n: (0, 0)),                # s_res
            pl.BlockSpec((HW, 9 * P), lambda n: (0, 0)),            # s_im2col
            pl.BlockSpec((Cb, Cin), lambda n: (0, 0)),              # w1
            pl.BlockSpec((Cb, 1), lambda n: (0, 0)),                # b1
            pl.BlockSpec((Cb, 9 * Cb), lambda n: (0, 0)),           # w2 (im2col)
            pl.BlockSpec((Cb, 1), lambda n: (0, 0)),                # b2
            pl.BlockSpec((Cout, Cb), lambda n: (0, 0)),             # w3 (perm)
            pl.BlockSpec((Cout, 1), lambda n: (0, 0)),              # b3 (perm)
            pl.BlockSpec((Cout, Cin), lambda n: (0, 0)),            # wr (perm)
            pl.BlockSpec((Cout, 1), lambda n: (0, 0)),              # br (perm)
        ],
        out_specs=pl.BlockSpec((None, R, g * P), lambda n: (n, 0, 0)),
    )

    out = pl.pallas_call(
        kernel,
        out_shape=jax.ShapeDtypeStruct((N, R, g * P), jnp.float32),
        grid_spec=grid_spec,
        compiler_params=pltpu.CompilerParams(
            dimension_semantics=("parallel",),
            vmem_limit_bytes=32 * 1024 * 1024),
    )(x, s_res, s_im, w1, b1, w2, b2, w3, b3, wr, br)

    # packed slab flattens in (cout, ho, wo) order -> free reshape to NCHW
    return out.reshape(N, Cout, Hout, Wout)


def init_params(key, in_channels, out_block_channels):
    """Deterministic synthetic parameters, PyTorch layouts (OIHW / [O])."""
    Cb, Cout = out_block_channels, 4 * out_block_channels
    ks = jax.random.split(key, 8)
    s = 0.1
    return {
        "w1": s * jax.random.normal(ks[0], (Cb, in_channels), jnp.float32),
        "b1": s * jax.random.normal(ks[1], (Cb,), jnp.float32),
        "w2": s * jax.random.normal(ks[2], (Cb, Cb, 3, 3), jnp.float32),
        "b2": s * jax.random.normal(ks[3], (Cb,), jnp.float32),
        "w3": s * jax.random.normal(ks[4], (Cout, Cb), jnp.float32),
        "b3": s * jax.random.normal(ks[5], (Cout,), jnp.float32),
        "wr": s * jax.random.normal(ks[6], (Cout, in_channels), jnp.float32),
        "br": s * jax.random.normal(ks[7], (Cout,), jnp.float32),
    }


def reference(x, params, stride):
    """Pure-JAX NCHW reference of the PyTorch forward (correctness check)."""
    dn = ("NCHW", "OIHW", "NCHW")

    def in_relu(v):
        m = jnp.mean(v, axis=(2, 3), keepdims=True)
        var = jnp.mean((v - m) ** 2, axis=(2, 3), keepdims=True)
        return jnp.maximum((v - m) * jax.lax.rsqrt(var + EPS), 0.0)

    def conv1x1(v, w, b, s=1):
        return jax.lax.conv_general_dilated(
            v, w[:, :, None, None], (s, s), "VALID",
            dimension_numbers=dn) + b[None, :, None, None]

    res = conv1x1(x, params["wr"], params["br"], stride)
    h = conv1x1(in_relu(x), params["w1"], params["b1"])
    hp = jnp.pad(in_relu(h), ((0, 0), (0, 0), (1, 1), (1, 1)), mode="reflect")
    h = jax.lax.conv_general_dilated(
        hp, params["w2"], (stride, stride), "VALID",
        dimension_numbers=dn) + params["b2"][None, :, None, None]
    h = conv1x1(in_relu(h), params["w3"], params["b3"])
    return h + res


if __name__ == "__main__":
    key = jax.random.PRNGKey(0)
    kx, kp = jax.random.split(key)

    # DownSampleResidualBlock(in_channels=4, out_block_channels=8,
    #                         stride=2, downsample=<not None>)
    N, Cin, H, W = 2, 4, 16, 16
    Cb, stride = 8, 2

    x = jax.random.normal(kx, (N, Cin, H, W), jnp.float32)
    params = init_params(kp, Cin, Cb)

    out = jax.block_until_ready(downsample_residual_block(x, params, stride))
    ref = jax.block_until_ready(reference(x, params, stride))

    Hout = (H - 1) // stride + 1
    assert out.shape == (N, 4 * Cb, Hout, Hout), out.shape
    if not jnp.allclose(out, ref, atol=2e-3, rtol=2e-3):
        raise AssertionError(
            f"mismatch vs reference, max_err={jnp.max(jnp.abs(out - ref))}")
    print("KERNEL_OK")
</pallas_src>

<mosaic_0001>
module attributes {stable_mosaic.version = 11 : i64} {
  func.func @kernel(%arg0: i32, %arg1: memref<1x4x256xf32, #tpu.memory_space<vmem>>, %arg2: memref<256x64xf32, #tpu.memory_space<vmem>>, %arg3: memref<256x576xf32, #tpu.memory_space<vmem>>, %arg4: memref<8x4xf32, #tpu.memory_space<vmem>>, %arg5: memref<8x1xf32, #tpu.memory_space<vmem>>, %arg6: memref<8x72xf32, #tpu.memory_space<vmem>>, %arg7: memref<8x1xf32, #tpu.memory_space<vmem>>, %arg8: memref<32x8xf32, #tpu.memory_space<vmem>>, %arg9: memref<32x1xf32, #tpu.memory_space<vmem>>, %arg10: memref<32x4xf32, #tpu.memory_space<vmem>>, %arg11: memref<32x1xf32, #tpu.memory_space<vmem>>, %arg12: memref<1x16x128xf32, #tpu.memory_space<vmem>>) attributes {dimension_semantics = [#tpu.dimension_semantics<parallel>], iteration_bounds = array<i64: 2>, scalar_prefetch = 0 : i64, scratch_operands = 0 : i64, tpu.core_type = #tpu.core_type<tc>, window_params = [{transform_indices = @transform_0, window_bounds = array<i64: 1, 4, 256>}, {pipeline_mode = #tpu.pipeline_mode<synchronous>, transform_indices = @transform_1, window_bounds = array<i64: 256, 64>}, {pipeline_mode = #tpu.pipeline_mode<synchronous>, transform_indices = @transform_2, window_bounds = array<i64: 256, 576>}, {pipeline_mode = #tpu.pipeline_mode<synchronous>, transform_indices = @transform_3, window_bounds = array<i64: 8, 4>}, {pipeline_mode = #tpu.pipeline_mode<synchronous>, transform_indices = @transform_4, window_bounds = array<i64: 8, 1>}, {pipeline_mode = #tpu.pipeline_mode<synchronous>, transform_indices = @transform_5, window_bounds = array<i64: 8, 72>}, {pipeline_mode = #tpu.pipeline_mode<synchronous>, transform_indices = @transform_6, window_bounds = array<i64: 8, 1>}, {pipeline_mode = #tpu.pipeline_mode<synchronous>, transform_indices = @transform_7, window_bounds = array<i64: 32, 8>}, {pipeline_mode = #tpu.pipeline_mode<synchronous>, transform_indices = @transform_8, window_bounds = array<i64: 32, 1>}, {pipeline_mode = #tpu.pipeline_mode<synchronous>, transform_indices = @transform_9, window_bounds = array<i64: 32, 4>}, {pipeline_mode = #tpu.pipeline_mode<synchronous>, transform_indices = @transform_10, window_bounds = array<i64: 32, 1>}, {transform_indices = @transform_11, window_bounds = array<i64: 1, 16, 128>}]} {
    %c0 = arith.constant 0 : index
    %c0_0 = arith.constant 0 : index
    %c0_1 = arith.constant 0 : index
    %0 = vector.load %arg1[%c0, %c0_0, %c0_1] : memref<1x4x256xf32, #tpu.memory_space<vmem>>, vector<1x4x256xf32>
    %1 = vector.shape_cast %0 : vector<1x4x256xf32> to vector<4x256xf32>
    %c0_2 = arith.constant 0 : index
    %c0_3 = arith.constant 0 : index
    %2 = vector.load %arg2[%c0_2, %c0_3] : memref<256x64xf32, #tpu.memory_space<vmem>>, vector<256x64xf32>
    %cst = arith.constant dense<0.000000e+00> : vector<4x64xf32>
    %3 = tpu.matmul %1, %2, %cst {dimension_numbers = #tpu.dot_dimension_numbers<[1], [0], [0], [1], [0, 0, 1, 1], [], []>} : vector<4x256xf32>, vector<256x64xf32>, vector<4x64xf32> -> vector<4x64xf32>
    %c0_4 = arith.constant 0 : index
    %c0_5 = arith.constant 0 : index
    %4 = vector.load %arg10[%c0_4, %c0_5] : memref<32x4xf32, #tpu.memory_space<vmem>>, vector<32x4xf32>
    %cst_6 = arith.constant dense<0.000000e+00> : vector<32x64xf32>
    %5 = tpu.matmul %4, %3, %cst_6 {dimension_numbers = #tpu.dot_dimension_numbers<[1], [0], [0], [1], [0, 0, 1, 1], [], []>} : vector<32x4xf32>, vector<4x64xf32>, vector<32x64xf32> -> vector<32x64xf32>
    %c0_7 = arith.constant 0 : index
    %c0_8 = arith.constant 0 : index
    %6 = vector.load %arg11[%c0_7, %c0_8] : memref<32x1xf32, #tpu.memory_space<vmem>>, vector<32x1xf32>
    %7 = vector.broadcast %6 : vector<32x1xf32> to vector<32x64xf32>
    %8 = arith.addf %5, %7 : vector<32x64xf32>
    %cst_9 = arith.constant dense<0.000000e+00> : vector<4xf32>
    %9 = vector.multi_reduction <add>, %1, %cst_9 [1] : vector<4x256xf32> to vector<4xf32>
    %10 = vector.shape_cast %9 : vector<4xf32> to vector<4x1xf32>
    %cst_10 = arith.constant 2.560000e+02 : f32
    %11 = vector.broadcast %cst_10 : f32 to vector<4x1xf32>
    %12 = arith.divf %10, %11 : vector<4x1xf32>
    %13 = vector.broadcast %12 : vector<4x1xf32> to vector<4x256xf32>
    %14 = arith.subf %1, %13 : vector<4x256xf32>
    %15 = arith.mulf %14, %14 : vector<4x256xf32>
    %cst_11 = arith.constant dense<0.000000e+00> : vector<4xf32>
    %16 = vector.multi_reduction <add>, %15, %cst_11 [1] : vector<4x256xf32> to vector<4xf32>
    %17 = vector.shape_cast %16 : vector<4xf32> to vector<4x1xf32>
    %cst_12 = arith.constant 2.560000e+02 : f32
    %18 = vector.broadcast %cst_12 : f32 to vector<4x1xf32>
    %19 = arith.divf %17, %18 : vector<4x1xf32>
    %20 = vector.broadcast %12 : vector<4x1xf32> to vector<4x256xf32>
    %21 = arith.subf %1, %20 : vector<4x256xf32>
    %cst_13 = arith.constant 9.99999974E-6 : f32
    %22 = vector.broadcast %cst_13 : f32 to vector<4x1xf32>
    %23 = arith.addf %19, %22 : vector<4x1xf32>
    %24 = math.rsqrt %23 : vector<4x1xf32>
    %25 = vector.broadcast %24 : vector<4x1xf32> to vector<4x256xf32>
    %26 = arith.mulf %21, %25 : vector<4x256xf32>
    %cst_14 = arith.constant 0.000000e+00 : f32
    %27 = vector.broadcast %cst_14 : f32 to vector<4x256xf32>
    %28 = arith.maximumf %26, %27 : vector<4x256xf32>
    %c0_15 = arith.constant 0 : index
    %c0_16 = arith.constant 0 : index
    %29 = vector.load %arg4[%c0_15, %c0_16] : memref<8x4xf32, #tpu.memory_space<vmem>>, vector<8x4xf32>
    %cst_17 = arith.constant dense<0.000000e+00> : vector<8x256xf32>
    %30 = tpu.matmul %29, %28, %cst_17 {dimension_numbers = #tpu.dot_dimension_numbers<[1], [0], [0], [1], [0, 0, 1, 1], [], []>} : vector<8x4xf32>, vector<4x256xf32>, vector<8x256xf32> -> vector<8x256xf32>
    %c0_18 = arith.constant 0 : index
    %c0_19 = arith.constant 0 : index
    %31 = vector.load %arg5[%c0_18, %c0_19] : memref<8x1xf32, #tpu.memory_space<vmem>>, vector<8x1xf32>
    %32 = vector.broadcast %31 : vector<8x1xf32> to vector<8x256xf32>
    %33 = arith.addf %30, %32 : vector<8x256xf32>
    %cst_20 = arith.constant dense<0.000000e+00> : vector<8xf32>
    %34 = vector.multi_reduction <add>, %33, %cst_20 [1] : vector<8x256xf32> to vector<8xf32>
    %35 = vector.shape_cast %34 : vector<8xf32> to vector<8x1xf32>
    %cst_21 = arith.constant 2.560000e+02 : f32
    %36 = vector.broadcast %cst_21 : f32 to vector<8x1xf32>
    %37 = arith.divf %35, %36 : vector<8x1xf32>
    %38 = vector.broadcast %37 : vector<8x1xf32> to vector<8x256xf32>
    %39 = arith.subf %33, %38 : vector<8x256xf32>
    %40 = arith.mulf %39, %39 : vector<8x256xf32>
    %cst_22 = arith.constant dense<0.000000e+00> : vector<8xf32>
    %41 = vector.multi_reduction <add>, %40, %cst_22 [1] : vector<8x256xf32> to vector<8xf32>
    %42 = vector.shape_cast %41 : vector<8xf32> to vector<8x1xf32>
    %cst_23 = arith.constant 2.560000e+02 : f32
    %43 = vector.broadcast %cst_23 : f32 to vector<8x1xf32>
    %44 = arith.divf %42, %43 : vector<8x1xf32>
    %45 = vector.broadcast %37 : vector<8x1xf32> to vector<8x256xf32>
    %46 = arith.subf %33, %45 : vector<8x256xf32>
    %cst_24 = arith.constant 9.99999974E-6 : f32
    %47 = vector.broadcast %cst_24 : f32 to vector<8x1xf32>
    %48 = arith.addf %44, %47 : vector<8x1xf32>
    %49 = math.rsqrt %48 : vector<8x1xf32>
    %50 = vector.broadcast %49 : vector<8x1xf32> to vector<8x256xf32>
    %51 = arith.mulf %46, %50 : vector<8x256xf32>
    %cst_25 = arith.constant 0.000000e+00 : f32
    %52 = vector.broadcast %cst_25 : f32 to vector<8x256xf32>
    %53 = arith.maximumf %51, %52 : vector<8x256xf32>
    %c0_26 = arith.constant 0 : index
    %c0_27 = arith.constant 0 : index
    %54 = vector.load %arg3[%c0_26, %c0_27] : memref<256x576xf32, #tpu.memory_space<vmem>>, vector<256x576xf32>
    %cst_28 = arith.constant dense<0.000000e+00> : vector<8x576xf32>
    %55 = tpu.matmul %53, %54, %cst_28 {dimension_numbers = #tpu.dot_dimension_numbers<[1], [0], [0], [1], [0, 0, 1, 1], [], []>} : vector<8x256xf32>, vector<256x576xf32>, vector<8x576xf32> -> vector<8x576xf32>
    %56 = vector.extract_strided_slice %55 {offsets = [0, 0], sizes = [8, 64], strides = [1, 1]} : vector<8x576xf32> to vector<8x64xf32>
    %57 = vector.extract_strided_slice %55 {offsets = [0, 64], sizes = [8, 64], strides = [1, 1]} : vector<8x576xf32> to vector<8x64xf32>
    %58 = vector.extract_strided_slice %55 {offsets = [0, 128], sizes = [8, 64], strides = [1, 1]} : vector<8x576xf32> to vector<8x64xf32>
    %59 = vector.extract_strided_slice %55 {offsets = [0, 192], sizes = [8, 64], strides = [1, 1]} : vector<8x576xf32> to vector<8x64xf32>
    %60 = vector.extract_strided_slice %55 {offsets = [0, 256], sizes = [8, 64], strides = [1, 1]} : vector<8x576xf32> to vector<8x64xf32>
    %61 = vector.extract_strided_slice %55 {offsets = [0, 320], sizes = [8, 64], strides = [1, 1]} : vector<8x576xf32> to vector<8x64xf32>
    %62 = vector.extract_strided_slice %55 {offsets = [0, 384], sizes = [8, 64], strides = [1, 1]} : vector<8x576xf32> to vector<8x64xf32>
    %63 = vector.extract_strided_slice %55 {offsets = [0, 448], sizes = [8, 64], strides = [1, 1]} : vector<8x576xf32> to vector<8x64xf32>
    %64 = vector.extract_strided_slice %55 {offsets = [0, 512], sizes = [8, 64], strides = [1, 1]} : vector<8x576xf32> to vector<8x64xf32>
    %65 = tpu.concatenate %56, %57, %58, %59, %60, %61, %62, %63, %64 in 0 : vector<8x64xf32>, vector<8x64xf32>, vector<8x64xf32>, vector<8x64xf32>, vector<8x64xf32>, vector<8x64xf32>, vector<8x64xf32>, vector<8x64xf32>, vector<8x64xf32> -> vector<72x64xf32>
    %c0_29 = arith.constant 0 : index
    %c0_30 = arith.constant 0 : index
    %66 = vector.load %arg6[%c0_29, %c0_30] : memref<8x72xf32, #tpu.memory_space<vmem>>, vector<8x72xf32>
    %cst_31 = arith.constant dense<0.000000e+00> : vector<8x64xf32>
    %67 = tpu.matmul %66, %65, %cst_31 {dimension_numbers = #tpu.dot_dimension_numbers<[1], [0], [0], [1], [0, 0, 1, 1], [], []>} : vector<8x72xf32>, vector<72x64xf32>, vector<8x64xf32> -> vector<8x64xf32>
    %c0_32 = arith.constant 0 : index
    %c0_33 = arith.constant 0 : index
    %68 = vector.load %arg7[%c0_32, %c0_33] : memref<8x1xf32, #tpu.memory_space<vmem>>, vector<8x1xf32>
    %69 = vector.broadcast %68 : vector<8x1xf32> to vector<8x64xf32>
    %70 = arith.addf %67, %69 : vector<8x64xf32>
    %cst_34 = arith.constant dense<0.000000e+00> : vector<8xf32>
    %71 = vector.multi_reduction <add>, %70, %cst_34 [1] : vector<8x64xf32> to vector<8xf32>
    %72 = vector.shape_cast %71 : vector<8xf32> to vector<8x1xf32>
    %cst_35 = arith.constant 6.400000e+01 : f32
    %73 = vector.broadcast %cst_35 : f32 to vector<8x1xf32>
    %74 = arith.divf %72, %73 : vector<8x1xf32>
    %75 = vector.broadcast %74 : vector<8x1xf32> to vector<8x64xf32>
    %76 = arith.subf %70, %75 : vector<8x64xf32>
    %77 = arith.mulf %76, %76 : vector<8x64xf32>
    %cst_36 = arith.constant dense<0.000000e+00> : vector<8xf32>
    %78 = vector.multi_reduction <add>, %77, %cst_36 [1] : vector<8x64xf32> to vector<8xf32>
    %79 = vector.shape_cast %78 : vector<8xf32> to vector<8x1xf32>
    %cst_37 = arith.constant 6.400000e+01 : f32
    %80 = vector.broadcast %cst_37 : f32 to vector<8x1xf32>
    %81 = arith.divf %79, %80 : vector<8x1xf32>
    %82 = vector.broadcast %74 : vector<8x1xf32> to vector<8x64xf32>
    %83 = arith.subf %70, %82 : vector<8x64xf32>
    %cst_38 = arith.constant 9.99999974E-6 : f32
    %84 = vector.broadcast %cst_38 : f32 to vector<8x1xf32>
    %85 = arith.addf %81, %84 : vector<8x1xf32>
    %86 = math.rsqrt %85 : vector<8x1xf32>
    %87 = vector.broadcast %86 : vector<8x1xf32> to vector<8x64xf32>
    %88 = arith.mulf %83, %87 : vector<8x64xf32>
    %cst_39 = arith.constant 0.000000e+00 : f32
    %89 = vector.broadcast %cst_39 : f32 to vector<8x64xf32>
    %90 = arith.maximumf %88, %89 : vector<8x64xf32>
    %c0_40 = arith.constant 0 : index
    %c0_41 = arith.constant 0 : index
    %91 = vector.load %arg8[%c0_40, %c0_41] : memref<32x8xf32, #tpu.memory_space<vmem>>, vector<32x8xf32>
    %cst_42 = arith.constant dense<0.000000e+00> : vector<32x64xf32>
    %92 = tpu.matmul %91, %90, %cst_42 {dimension_numbers = #tpu.dot_dimension_numbers<[1], [0], [0], [1], [0, 0, 1, 1], [], []>} : vector<32x8xf32>, vector<8x64xf32>, vector<32x64xf32> -> vector<32x64xf32>
    %c0_43 = arith.constant 0 : index
    %c0_44 = arith.constant 0 : index
    %93 = vector.load %arg9[%c0_43, %c0_44] : memref<32x1xf32, #tpu.memory_space<vmem>>, vector<32x1xf32>
    %94 = vector.broadcast %93 : vector<32x1xf32> to vector<32x64xf32>
    %95 = arith.addf %92, %94 : vector<32x64xf32>
    %96 = arith.addf %95, %8 : vector<32x64xf32>
    %97 = vector.extract_strided_slice %96 {offsets = [0, 0], sizes = [16, 64], strides = [1, 1]} : vector<32x64xf32> to vector<16x64xf32>
    %98 = vector.extract_strided_slice %96 {offsets = [16, 0], sizes = [16, 64], strides = [1, 1]} : vector<32x64xf32> to vector<16x64xf32>
    %99 = tpu.concatenate %97, %98 in 1 : vector<16x64xf32>, vector<16x64xf32> -> vector<16x128xf32>
    %c0_45 = arith.constant 0 : index
    %c0_46 = arith.constant 0 : index
    %c0_47 = arith.constant 0 : index
    %100 = vector.load %arg12[%c0_45, %c0_46, %c0_47] : memref<1x16x128xf32, #tpu.memory_space<vmem>>, vector<1x16x128xf32>
    %101 = vector.shape_cast %100 : vector<1x16x128xf32> to vector<16x128xf32>
    %102 = vector.shape_cast %99 : vector<16x128xf32> to vector<1x16x128xf32>
    tpu.vector_store %arg12[%c0_45, %c0_46, %c0_47], %102 {strides = array<i32>} : memref<1x16x128xf32, #tpu.memory_space<vmem>>, vector<1x16x128xf32>,
    return
  }
  func.func @transform_0(%arg0: i32) -> (i32, i32, i32) {
    %c0_i32 = arith.constant 0 : i32
    %c0_i32_0 = arith.constant 0 : i32
    %c0_i32_1 = arith.constant 0 : i32
    return %arg0, %c0_i32, %c0_i32_0 : i32, i32, i32
  }
  func.func @transform_1(%arg0: i32) -> (i32, i32) {
    %c0_i32 = arith.constant 0 : i32
    %c0_i32_0 = arith.constant 0 : i32
    %c0_i32_1 = arith.constant 0 : i32
    return %c0_i32, %c0_i32_0 : i32, i32
  }
  func.func @transform_2(%arg0: i32) -> (i32, i32) {
    %c0_i32 = arith.constant 0 : i32
    %c0_i32_0 = arith.constant 0 : i32
    %c0_i32_1 = arith.constant 0 : i32
    return %c0_i32, %c0_i32_0 : i32, i32
  }
  func.func @transform_3(%arg0: i32) -> (i32, i32) {
    %c0_i32 = arith.constant 0 : i32
    %c0_i32_0 = arith.constant 0 : i32
    %c0_i32_1 = arith.constant 0 : i32
    return %c0_i32, %c0_i32_0 : i32, i32
  }
  func.func @transform_4(%arg0: i32) -> (i32, i32) {
    %c0_i32 = arith.constant 0 : i32
    %c0_i32_0 = arith.constant 0 : i32
    %c0_i32_1 = arith.constant 0 : i32
    return %c0_i32, %c0_i32_0 : i32, i32
  }
  func.func @transform_5(%arg0: i32) -> (i32, i32) {
    %c0_i32 = arith.constant 0 : i32
    %c0_i32_0 = arith.constant 0 : i32
    %c0_i32_1 = arith.constant 0 : i32
    return %c0_i32, %c0_i32_0 : i32, i32
  }
  func.func @transform_6(%arg0: i32) -> (i32, i32) {
    %c0_i32 = arith.constant 0 : i32
    %c0_i32_0 = arith.constant 0 : i32
    %c0_i32_1 = arith.constant 0 : i32
    return %c0_i32, %c0_i32_0 : i32, i32
  }
  func.func @transform_7(%arg0: i32) -> (i32, i32) {
    %c0_i32 = arith.constant 0 : i32
    %c0_i32_0 = arith.constant 0 : i32
    %c0_i32_1 = arith.constant 0 : i32
    return %c0_i32, %c0_i32_0 : i32, i32
  }
  func.func @transform_8(%arg0: i32) -> (i32, i32) {
    %c0_i32 = arith.constant 0 : i32
    %c0_i32_0 = arith.constant 0 : i32
    %c0_i32_1 = arith.constant 0 : i32
    return %c0_i32, %c0_i32_0 : i32, i32
  }
  func.func @transform_9(%arg0: i32) -> (i32, i32) {
    %c0_i32 = arith.constant 0 : i32
    %c0_i32_0 = arith.constant 0 : i32
    %c0_i32_1 = arith.constant 0 : i32
    return %c0_i32, %c0_i32_0 : i32, i32
  }
  func.func @transform_10(%arg0: i32) -> (i32, i32) {
    %c0_i32 = arith.constant 0 : i32
    %c0_i32_0 = arith.constant 0 : i32
    %c0_i32_1 = arith.constant 0 : i32
    return %c0_i32, %c0_i32_0 : i32, i32
  }
  func.func @transform_11(%arg0: i32) -> (i32, i32, i32) {
    %c0_i32 = arith.constant 0 : i32
    %c0_i32_0 = arith.constant 0 : i32
    %c0_i32_1 = arith.constant 0 : i32
    return %arg0, %c0_i32, %c0_i32_0 : i32, i32, i32
  }
}

</mosaic_0001>

<llo_original>
// kernel: tpu_custom_call.1
$region0: #{tpu_custom_call.1}
  #allocation0 [shape = 'u32[]', space=smem, size = 0x4, offset = 0x4, fixed_abs, tag = 'smem constant byte address 0x4 - core index']
  #allocation1 [shape = 'u32[72,128]{1,0:T(1,128)}', space=vmem, size = 0x9000, scoped, tag = 'internal scratch']
  %s0 = inlined_call_operand.vmem [shape: f32[2,4,256], index: 0, kind: input, shape index: {}]
  %s1 = inlined_call_operand.vmem [shape: f32[256,64], index: 1, kind: input, shape index: {}]
  %s2 = inlined_call_operand.vmem [shape: f32[256,576], index: 2, kind: input, shape index: {}]
  %s3 = inlined_call_operand.vmem [shape: f32[8,4], index: 3, kind: input, shape index: {}]
  %s4 = inlined_call_operand.vmem [shape: f32[8,1], index: 4, kind: input, shape index: {}]
  %s5 = inlined_call_operand.vmem [shape: f32[8,72], index: 5, kind: input, shape index: {}]
  %s6 = inlined_call_operand.vmem [shape: f32[8,1], index: 6, kind: input, shape index: {}]
  %s7 = inlined_call_operand.vmem [shape: f32[32,8], index: 7, kind: input, shape index: {}]
  %s8 = inlined_call_operand.vmem [shape: f32[32,1], index: 8, kind: input, shape index: {}]
  %s9 = inlined_call_operand.vmem [shape: f32[32,4], index: 9, kind: input, shape index: {}]
  %s10 = inlined_call_operand.vmem [shape: f32[32,1], index: 10, kind: input, shape index: {}]
  %s11 = inlined_call_operand.hbm [shape: f32[2,16,128], index: 11, kind: output, shape index: {}]
  %s12 = sld [smem:[#allocation0]]
  $region77: #{tpu_custom_call.1} parent=0
    _
  %s14 = ssub.s32 1, %s12
  %s15 = scalar_select 0, %s14, %s12
  $region1: #{tpu_custom_call.1} parent=0
    #allocation2 [shape = 'u8[16384]{0}', space=vmem, size = 0x4000, scoped, tag = 'output window, operand 0']
    #allocation3 [shape = 's32[2]{0}', space=sflag, size = 0x8, scoped, tag = 'scoped memory for tpu_custom_call.1']
    %16 = vsyncpa [#allocation3], 0
    %s17 = scalar_lea.sflag [#allocation3], 1
    %18 = vsyncpa %s17, 0
    loop: start=0, step=1, limit=4
    $region2: #{tpu_custom_call.1} parent=1 // loop_pre_header
      _
    $region3: #{tpu_custom_call.1} parent=1 // loop_header
      %s20 = sphi 0, %s24
      %p21 = scmp.ge.s32.totalorder %s20, 4
      %s30 = sphi 0, %s32
      %s33 = sphi 0, %s30
      %s34 = sphi 0, %s33
      %s50 = sphi 0, %s34
      %s54 = sphi 0, %s54
      %s56 = sphi 0, %s54
      %s57 = sphi 0, %s56
      %s71 = sphi 0, %s57
      %s75 = sphi 0, %s75
      %s77 = sphi 0, %s75
      %s78 = sphi 0, %s77
      %s92 = sphi 0, %s78
      %s96 = sphi 0, %s96
      %s98 = sphi 0, %s96
      %s99 = sphi 0, %s98
      %s113 = sphi 0, %s99
      %s117 = sphi 0, %s117
      %s119 = sphi 0, %s117
      %s120 = sphi 0, %s119
      %s134 = sphi 0, %s120
      %s138 = sphi 0, %s138
      %s140 = sphi 0, %s138
      %s141 = sphi 0, %s140
      %s155 = sphi 0, %s141
      %s159 = sphi 0, %s159
      %s161 = sphi 0, %s159
      %s162 = sphi 0, %s161
      %s176 = sphi 0, %s162
      %s180 = sphi 0, %s180
      %s182 = sphi 0, %s180
      %s183 = sphi 0, %s182
      %s197 = sphi 0, %s183
      %s201 = sphi 0, %s201
      %s203 = sphi 0, %s201
      %s204 = sphi 0, %s203
      %s218 = sphi 0, %s204
      %s222 = sphi 0, %s222
      %s224 = sphi 0, %s222
      %s225 = sphi 0, %s224
      %s239 = sphi 0, %s225
      %s243 = sphi 0, %s243
      %s245 = sphi 0, %s243
      %s246 = sphi 0, %s245
      %s260 = sphi 0, %s246
      %s266 = sphi 0, %s268
      %s269 = sphi 0, %s266
      %s270 = sphi 0, %s269
      %s286 = sphi 0, %s270
    $region4: #{tpu_custom_call.1} parent=1 // loop_header_branch
      %23 = sbr.rel (%p21) target = $region8
    $region5: #{tpu_custom_call.1} parent=1 // loop_body
      %s25 = ssub.s32 %s20, 1
      %s26 = ssub.s32 %s20, 2
      %s27 = sadd.s32 %s20, 1
      %s28 = ssub.s32 %s20, %s27
      %p29 = scmp.eq.s32.totalorder %s28, 0
      %s31 = sadd.s32 %s30, 1
      %s32 = scalar_select %p29, %s30, %s31
      %p35 = pneg %p29
      %p36 = scmp.eq.s32.totalorder %s20, 1
      %p37 = por %p35, %p36
      %p38 = scmp.ne.s32.totalorder %s30, %s33
      %p39 = scmp.eq.s32.totalorder %s20, 0
      %p40 = por %p38, %p39
      %p41 = scmp.ne.s32.totalorder %s30, %s33
      %p42 = scmp.eq.s32.totalorder %s25, 1
      %p43 = por %p41, %p42
      %p44 = scmp.ne.s32.totalorder %s33, %s34
      %p45 = scmp.eq.s32.totalorder %s25, 0
      %p46 = por %p44, %p45
      %p47 = scmp.ne.s32.totalorder %s33, %s34
      %p48 = scmp.eq.s32.totalorder %s26, 1
      %p49 = por %p47, %p48
      %p51 = scmp.ne.s32.totalorder %s34, %s50
      %p52 = scmp.eq.s32.totalorder %s26, 0
      %p53 = por %p51, %p52
      %s55 = sadd.s32 %s54, 1
      %p58 = scmp.eq.s32.totalorder %s20, 1
      %p59 = scmp.ne.s32.totalorder %s54, %s56
      %p60 = scmp.eq.s32.totalorder %s20, 0
      %p61 = por %p59, %p60
      %p62 = scmp.ne.s32.totalorder %s54, %s56
      %p63 = scmp.eq.s32.totalorder %s25, 1
      %p64 = por %p62, %p63
      %p65 = scmp.ne.s32.totalorder %s56, %s57
      %p66 = scmp.eq.s32.totalorder %s25, 0
      %p67 = por %p65, %p66
      %p68 = scmp.ne.s32.totalorder %s56, %s57
      %p69 = scmp.eq.s32.totalorder %s26, 1
      %p70 = por %p68, %p69
      %p72 = scmp.ne.s32.totalorder %s57, %s71
      %p73 = scmp.eq.s32.totalorder %s26, 0
      %p74 = por %p72, %p73
      %s76 = sadd.s32 %s75, 1
      %p79 = scmp.eq.s32.totalorder %s20, 1
      %p80 = scmp.ne.s32.totalorder %s75, %s77
      %p81 = scmp.eq.s32.totalorder %s20, 0
      %p82 = por %p80, %p81
      %p83 = scmp.ne.s32.totalorder %s75, %s77
      %p84 = scmp.eq.s32.totalorder %s25, 1
      %p85 = por %p83, %p84
      %p86 = scmp.ne.s32.totalorder %s77, %s78
      %p87 = scmp.eq.s32.totalorder %s25, 0
      %p88 = por %p86, %p87
      %p89 = scmp.ne.s32.totalorder %s77, %s78
      %p90 = scmp.eq.s32.totalorder %s26, 1
      %p91 = por %p89, %p90
      %p93 = scmp.ne.s32.totalorder %s78, %s92
      %p94 = scmp.eq.s32.totalorder %s26, 0
      %p95 = por %p93, %p94
      %s97 = sadd.s32 %s96, 1
      %p100 = scmp.eq.s32.totalorder %s20, 1
      %p101 = scmp.ne.s32.totalorder %s96, %s98
      %p102 = scmp.eq.s32.totalorder %s20, 0
      %p103 = por %p101, %p102
      %p104 = scmp.ne.s32.totalorder %s96, %s98
      %p105 = scmp.eq.s32.totalorder %s25, 1
      %p106 = por %p104, %p105
      %p107 = scmp.ne.s32.totalorder %s98, %s99
      %p108 = scmp.eq.s32.totalorder %s25, 0
      %p109 = por %p107, %p108
      %p110 = scmp.ne.s32.totalorder %s98, %s99
      %p111 = scmp.eq.s32.totalorder %s26, 1
      %p112 = por %p110, %p111
      %p114 = scmp.ne.s32.totalorder %s99, %s113
      %p115 = scmp.eq.s32.totalorder %s26, 0
      %p116 = por %p114, %p115
      %s118 = sadd.s32 %s117, 1
      %p121 = scmp.eq.s32.totalorder %s20, 1
      %p122 = scmp.ne.s32.totalorder %s117, %s119
      %p123 = scmp.eq.s32.totalorder %s20, 0
      %p124 = por %p122, %p123
      %p125 = scmp.ne.s32.totalorder %s117, %s119
      %p126 = scmp.eq.s32.totalorder %s25, 1
      %p127 = por %p125, %p126
      %p128 = scmp.ne.s32.totalorder %s119, %s120
      %p129 = scmp.eq.s32.totalorder %s25, 0
      %p130 = por %p128, %p129
      %p131 = scmp.ne.s32.totalorder %s119, %s120
      %p132 = scmp.eq.s32.totalorder %s26, 1
      %p133 = por %p131, %p132
      %p135 = scmp.ne.s32.totalorder %s120, %s134
      %p136 = scmp.eq.s32.totalorder %s26, 0
      %p137 = por %p135, %p136
      %s139 = sadd.s32 %s138, 1
      %p142 = scmp.eq.s32.totalorder %s20, 1
      %p143 = scmp.ne.s32.totalorder %s138, %s140
      %p144 = scmp.eq.s32.totalorder %s20, 0
      %p145 = por %p143, %p144
      %p146 = scmp.ne.s32.totalorder %s138, %s140
      %p147 = scmp.eq.s32.totalorder %s25, 1
      %p148 = por %p146, %p147
      %p149 = scmp.ne.s32.totalorder %s140, %s141
      %p150 = scmp.eq.s32.totalorder %s25, 0
      %p151 = por %p149, %p150
      %p152 = scmp.ne.s32.totalorder %s140, %s141
      %p153 = scmp.eq.s32.totalorder %s26, 1
      %p154 = por %p152, %p153
      %p156 = scmp.ne.s32.totalorder %s141, %s155
      %p157 = scmp.eq.s32.totalorder %s26, 0
      %p158 = por %p156, %p157
      %s160 = sadd.s32 %s159, 1
      %p163 = scmp.eq.s32.totalorder %s20, 1
      %p164 = scmp.ne.s32.totalorder %s159, %s161
      %p165 = scmp.eq.s32.totalorder %s20, 0
      %p166 = por %p164, %p165
      %p167 = scmp.ne.s32.totalorder %s159, %s161
      %p168 = scmp.eq.s32.totalorder %s25, 1
      %p169 = por %p167, %p168
      %p170 = scmp.ne.s32.totalorder %s161, %s162
      %p171 = scmp.eq.s32.totalorder %s25, 0
      %p172 = por %p170, %p171
      %p173 = scmp.ne.s32.totalorder %s161, %s162
      %p174 = scmp.eq.s32.totalorder %s26, 1
      %p175 = por %p173, %p174
      %p177 = scmp.ne.s32.totalorder %s162, %s176
      %p178 = scmp.eq.s32.totalorder %s26, 0
      %p179 = por %p177, %p178
      %s181 = sadd.s32 %s180, 1
      %p184 = scmp.eq.s32.totalorder %s20, 1
      %p185 = scmp.ne.s32.totalorder %s180, %s182
      %p186 = scmp.eq.s32.totalorder %s20, 0
      %p187 = por %p185, %p186
      %p188 = scmp.ne.s32.totalorder %s180, %s182
      %p189 = scmp.eq.s32.totalorder %s25, 1
      %p190 = por %p188, %p189
      %p191 = scmp.ne.s32.totalorder %s182, %s183
      %p192 = scmp.eq.s32.totalorder %s25, 0
      %p193 = por %p191, %p192
      %p194 = scmp.ne.s32.totalorder %s182, %s183
      %p195 = scmp.eq.s32.totalorder %s26, 1
      %p196 = por %p194, %p195
      %p198 = scmp.ne.s32.totalorder %s183, %s197
      %p199 = scmp.eq.s32.totalorder %s26, 0
      %p200 = por %p198, %p199
      %s202 = sadd.s32 %s201, 1
      %p205 = scmp.eq.s32.totalorder %s20, 1
      %p206 = scmp.ne.s32.totalorder %s201, %s203
      %p207 = scmp.eq.s32.totalorder %s20, 0
      %p208 = por %p206, %p207
      %p209 = scmp.ne.s32.totalorder %s201, %s203
      %p210 = scmp.eq.s32.totalorder %s25, 1
      %p211 = por %p209, %p210
      %p212 = scmp.ne.s32.totalorder %s203, %s204
      %p213 = scmp.eq.s32.totalorder %s25, 0
      %p214 = por %p212, %p213
      %p215 = scmp.ne.s32.totalorder %s203, %s204
      %p216 = scmp.eq.s32.totalorder %s26, 1
      %p217 = por %p215, %p216
      %p219 = scmp.ne.s32.totalorder %s204, %s218
      %p220 = scmp.eq.s32.totalorder %s26, 0
      %p221 = por %p219, %p220
      %s223 = sadd.s32 %s222, 1
      %p226 = scmp.eq.s32.totalorder %s20, 1
      %p227 = scmp.ne.s32.totalorder %s222, %s224
      %p228 = scmp.eq.s32.totalorder %s20, 0
      %p229 = por %p227, %p228
      %p230 = scmp.ne.s32.totalorder %s222, %s224
      %p231 = scmp.eq.s32.totalorder %s25, 1
      %p232 = por %p230, %p231
      %p233 = scmp.ne.s32.totalorder %s224, %s225
      %p234 = scmp.eq.s32.totalorder %s25, 0
      %p235 = por %p233, %p234
      %p236 = scmp.ne.s32.totalorder %s224, %s225
      %p237 = scmp.eq.s32.totalorder %s26, 1
      %p238 = por %p236, %p237
      %p240 = scmp.ne.s32.totalorder %s225, %s239
      %p241 = scmp.eq.s32.totalorder %s26, 0
      %p242 = por %p240, %p241
      %s244 = sadd.s32 %s243, 1
      %p247 = scmp.eq.s32.totalorder %s20, 1
      %p248 = scmp.ne.s32.totalorder %s243, %s245
      %p249 = scmp.eq.s32.totalorder %s20, 0
      %p250 = por %p248, %p249
      %p251 = scmp.ne.s32.totalorder %s243, %s245
      %p252 = scmp.eq.s32.totalorder %s25, 1
      %p253 = por %p251, %p252
      %p254 = scmp.ne.s32.totalorder %s245, %s246
      %p255 = scmp.eq.s32.totalorder %s25, 0
      %p256 = por %p254, %p255
      %p257 = scmp.ne.s32.totalorder %s245, %s246
      %p258 = scmp.eq.s32.totalorder %s26, 1
      %p259 = por %p257, %p258
      %p261 = scmp.ne.s32.totalorder %s246, %s260
      %p262 = scmp.eq.s32.totalorder %s26, 0
      %p263 = por %p261, %p262
      %s264 = ssub.s32 %s20, %s27
      %p265 = scmp.eq.s32.totalorder %s264, 0
      %s267 = sadd.s32 %s266, 1
      %s268 = scalar_select %p265, %s266, %s267
      %p271 = pneg %p265
      %p272 = scmp.eq.s32.totalorder %s20, 1
      %p273 = por %p271, %p272
      %p274 = scmp.ne.s32.totalorder %s266, %s269
      %p275 = scmp.eq.s32.totalorder %s20, 0
      %p276 = por %p274, %p275
      %p277 = scmp.ne.s32.totalorder %s266, %s269
      %p278 = scmp.eq.s32.totalorder %s25, 1
      %p279 = por %p277, %p278
      %p280 = scmp.ne.s32.totalorder %s269, %s270
      %p281 = scmp.eq.s32.totalorder %s25, 0
      %p282 = por %p280, %p281
      %p283 = scmp.ne.s32.totalorder %s269, %s270
      %p284 = scmp.eq.s32.totalorder %s26, 1
      %p285 = por %p283, %p284
      %p287 = scmp.ne.s32.totalorder %s270, %s286
      %p288 = scmp.eq.s32.totalorder %s26, 0
      %p289 = por %p287, %p288
      %p290 = scmp.le.s32.totalorder 1, %s20
      %p291 = scmp.lt.s32.totalorder %s20, 3
      %p292 = pnand %p290, %p291
      %p293 = pneg %p292
      // Predicated region
      $region9: #{tpu_custom_call.1} parent=5 // pred_check
        _
      $region10: #{tpu_custom_call.1} parent=5 // pred_check_branch
        %295 = sbr.rel (%p292) target = $region12
      $region11: #{tpu_custom_call.1} parent=5 // pred_region
        %s296 = ssub.s32 %s20, 1
        // Predicated region
        $region13: #{tpu_custom_call.1} parent=11 // pred_check
          %p297 = pneg %p67
        $region14: #{tpu_custom_call.1} parent=11 // pred_check_branch
          %299 = sbr.rel (%p297) target = $region16
        $region15: #{tpu_custom_call.1} parent=11 // pred_region
          _
        $region16: #{tpu_custom_call.1} parent=11 // pred_fallthru
          _
        // Predicated region
        $region17: #{tpu_custom_call.1} parent=11 // pred_check
          %p300 = pneg %p88
        $region18: #{tpu_custom_call.1} parent=11 // pred_check_branch
          %302 = sbr.rel (%p300) target = $region20
        $region19: #{tpu_custom_call.1} parent=11 // pred_region
          _
        $region20: #{tpu_custom_call.1} parent=11 // pred_fallthru
          _
        // Predicated region
        $region21: #{tpu_custom_call.1} parent=11 // pred_check
          %p303 = pneg %p109
        $region22: #{tpu_custom_call.1} parent=11 // pred_check_branch
          %305 = sbr.rel (%p303) target = $region24
        $region23: #{tpu_custom_call.1} parent=11 // pred_region
          _
        $region24: #{tpu_custom_call.1} parent=11 // pred_fallthru
          _
        // Predicated region
        $region25: #{tpu_custom_call.1} parent=11 // pred_check
          %p306 = pneg %p130
        $region26: #{tpu_custom_call.1} parent=11 // pred_check_branch
          %308 = sbr.rel (%p306) target = $region28
        $region27: #{tpu_custom_call.1} parent=11 // pred_region
          _
        $region28: #{tpu_custom_call.1} parent=11 // pred_fallthru
          _
        // Predicated region
        $region29: #{tpu_custom_call.1} parent=11 // pred_check
          %p309 = pneg %p151
        $region30: #{tpu_custom_call.1} parent=11 // pred_check_branch
          %311 = sbr.rel (%p309) target = $region32
        $region31: #{tpu_custom_call.1} parent=11 // pred_region
          _
        $region32: #{tpu_custom_call.1} parent=11 // pred_fallthru
          _
        // Predicated region
        $region33: #{tpu_custom_call.1} parent=11 // pred_check
          %p312 = pneg %p172
        $region34: #{tpu_custom_call.1} parent=11 // pred_check_branch
          %314 = sbr.rel (%p312) target = $region36
        $region35: #{tpu_custom_call.1} parent=11 // pred_region
          _
        $region36: #{tpu_custom_call.1} parent=11 // pred_fallthru
          _
        // Predicated region
        $region37: #{tpu_custom_call.1} parent=11 // pred_check
          %p315 = pneg %p193
        $region38: #{tpu_custom_call.1} parent=11 // pred_check_branch
          %317 = sbr.rel (%p315) target = $region40
        $region39: #{tpu_custom_call.1} parent=11 // pred_region
          _
        $region40: #{tpu_custom_call.1} parent=11 // pred_fallthru
          _
        // Predicated region
        $region41: #{tpu_custom_call.1} parent=11 // pred_check
          %p318 = pneg %p214
        $region42: #{tpu_custom_call.1} parent=11 // pred_check_branch
          %320 = sbr.rel (%p318) target = $region44
        $region43: #{tpu_custom_call.1} parent=11 // pred_region
          _
        $region44: #{tpu_custom_call.1} parent=11 // pred_fallthru
          _
        // Predicated region
        $region45: #{tpu_custom_call.1} parent=11 // pred_check
          %p321 = pneg %p235
        $region46: #{tpu_custom_call.1} parent=11 // pred_check_branch
          %323 = sbr.rel (%p321) target = $region48
        $region47: #{tpu_custom_call.1} parent=11 // pred_region
          _
        $region48: #{tpu_custom_call.1} parent=11 // pred_fallthru
          _
        // Predicated region
        $region49: #{tpu_custom_call.1} parent=11 // pred_check
          %p324 = pneg %p256
        $region50: #{tpu_custom_call.1} parent=11 // pred_check_branch
          %326 = sbr.rel (%p324) target = $region52
        $region51: #{tpu_custom_call.1} parent=11 // pred_region
          _
        $region52: #{tpu_custom_call.1} parent=11 // pred_fallthru
          _
      $region12: #{tpu_custom_call.1} parent=5 // pred_fallthru
        _
      %p327 = scmp.lt.s32.totalorder %s20, 2
      // Predicated region
      $region53: #{tpu_custom_call.1} parent=5 // pred_check
        %p328 = pneg %p327
      $region54: #{tpu_custom_call.1} parent=5 // pred_check_branch
        %330 = sbr.rel (%p328) target = $region56
      $region55: #{tpu_custom_call.1} parent=5 // pred_region
        // Predicated region
        $region57: #{tpu_custom_call.1} parent=55 // pred_check
          %p331 = pneg %p40
        $region58: #{tpu_custom_call.1} parent=55 // pred_check_branch
          %333 = sbr.rel (%p331) target = $region60
        $region59: #{tpu_custom_call.1} parent=55 // pred_region
          %p334 = scmp.lt.s32.totalorder %s20, 1
          %s335 = scalar_select %p334, %s20, 1
          %s336 = smul.addr %s335, 2
          %s337 = smul.addr %s336, 4
          %s338 = scalar_lea.vmem %s0, %s337
        $region60: #{tpu_custom_call.1} parent=55 // pred_fallthru
          _
      $region56: #{tpu_custom_call.1} parent=5 // pred_fallthru
        _
      %p339 = scmp.le.s32.totalorder 1, %s20
      %p340 = scmp.lt.s32.totalorder %s20, 3
      %p341 = pnand %p339, %p340
      %p342 = pneg %p341
      // Predicated region
      $region61: #{tpu_custom_call.1} parent=5 // pred_check
        _
      $region62: #{tpu_custom_call.1} parent=5 // pred_check_branch
        %344 = sbr.rel (%p341) target = $region64
      $region63: #{tpu_custom_call.1} parent=5 // pred_region
        %s345 = ssub.s32 %s20, 1
        %p346 = scmp.lt.s32.totalorder %s25, 1
        %s347 = scalar_select %p346, %s25, 1
        %s348 = smul.addr %s347, 2
        %s349 = smul.addr %s348, 4
        %s350 = scalar_lea.vmem %s0, %s349
        %p351 = pneg %p46
        %p352 = pneg %p43
        %p353 = pneg %p67
        %p354 = pneg %p64
        %p355 = pneg %p88
        %p356 = pneg %p85
        %p357 = pneg %p109
        %p358 = pneg %p106
        %p359 = pneg %p130
        %p360 = pneg %p127
        %p361 = pneg %p151
        %p362 = pneg %p148
        %p363 = pneg %p172
        %p364 = pneg %p169
        %p365 = pneg %p193
        %p366 = pneg %p190
        %p367 = pneg %p214
        %p368 = pneg %p211
        %p369 = pneg %p235
        %p370 = pneg %p232
        %p371 = pneg %p256
        %p372 = pneg %p253
        %p373 = pneg %p282
        %p374 = pneg %p279
        %s375 = sand.u32 %s269, 1
        %s376 = scalar_lea.sflag [#allocation3], %s375
        %s377 = sand.u32 %s269, 1
        %s378 = smul.addr %s377, 16
        %s379 = scalar_lea.vmem [#allocation2], %s378
        %p380 = scmp.lt.s32.totalorder %s25, 1
        %s381 = scalar_select %p380, %s25, 1
        %s382 = smul.addr %s381, 2
        %s383 = smul.addr %s382, 4
        %s384 = scalar_lea.vmem %s0, %s383
        %v385 = vld [vmem:[%s384] sm:$0xff]
        %v386 = vld [vmem:[%s1] sm:$0xff]
        %v387 = vld [vmem:[%s1 + $0x8] sm:$0xff]
        %v388 = vld [vmem:[%s1 + $0x10] sm:$0xff]
        %v389 = vld [vmem:[%s1 + $0x18] sm:$0xff]
        %v390 = vld [vmem:[%s1 + $0x20] sm:$0xff]
        %v391 = vld [vmem:[%s1 + $0x28] sm:$0xff]
        %v392 = vld [vmem:[%s1 + $0x30] sm:$0xff]
        %v393 = vld [vmem:[%s1 + $0x38] sm:$0xff]
        %v394 = vld [vmem:[%s1 + $0x40] sm:$0xff]
        %v395 = vld [vmem:[%s1 + $0x48] sm:$0xff]
        %v396 = vld [vmem:[%s1 + $0x50] sm:$0xff]
        %v397 = vld [vmem:[%s1 + $0x58] sm:$0xff]
        %v398 = vld [vmem:[%s1 + $0x60] sm:$0xff]
        %v399 = vld [vmem:[%s1 + $0x68] sm:$0xff]
        %v400 = vld [vmem:[%s1 + $0x70] sm:$0xff]
        %v401 = vld [vmem:[%s1 + $0x78] sm:$0xff]
        %v402 = vld [vmem:[%s1 + $0x80] sm:$0xff]
        %v403 = vld [vmem:[%s1 + $0x88] sm:$0xff]
        %v404 = vld [vmem:[%s1 + $0x90] sm:$0xff]
        %v405 = vld [vmem:[%s1 + $0x98] sm:$0xff]
        %v406 = vld [vmem:[%s1 + $0xa0] sm:$0xff]
        %v407 = vld [vmem:[%s1 + $0xa8] sm:$0xff]
        %v408 = vld [vmem:[%s1 + $0xb0] sm:$0xff]
        %v409 = vld [vmem:[%s1 + $0xb8] sm:$0xff]
        %v410 = vld [vmem:[%s1 + $0xc0] sm:$0xff]
        %v411 = vld [vmem:[%s1 + $0xc8] sm:$0xff]
        %v412 = vld [vmem:[%s1 + $0xd0] sm:$0xff]
        %v413 = vld [vmem:[%s1 + $0xd8] sm:$0xff]
        %v414 = vld [vmem:[%s1 + $0xe0] sm:$0xff]
        %v415 = vld [vmem:[%s1 + $0xe8] sm:$0xff]
        %v416 = vld [vmem:[%s1 + $0xf0] sm:$0xff]
        %v417 = vld [vmem:[%s1 + $0xf8] sm:$0xff]
        %419 = vst [vmem:[#allocation1] ss:$2 sm:$0xff] %v385
        %v420 = vld.sshfl [vmem:[#allocation1] sm:$0xff pattern:$0x75316420]
        %v421 = vld.sshfl [vmem:[#allocation1 + $0x8] sm:$0xff pattern:$0x75316420]
        %424 = vmatpush.msra.mxu0 %v401
        %425 = vmatpush.msra.mxu0 %v400
        %426 = vmatpush.msra.mxu0 %v399
        %427 = vmatpush.msra.mxu0 %v398
        %428 = vmatpush.msra.mxu0 %v397
        %429 = vmatpush.msra.mxu0 %v396
        %430 = vmatpush.msra.mxu0 %v395
        %431 = vmatpush.msra.mxu0 %v394
        %432 = vmatpush.msra.mxu0 %v393
        %433 = vmatpush.msra.mxu0 %v392
        %434 = vmatpush.msra.mxu0 %v391
        %435 = vmatpush.msra.mxu0 %v390
        %436 = vmatpush.msra.mxu0 %v389
        %437 = vmatpush.msra.mxu0 %v388
        %438 = vmatpush.msra.mxu0 %v387
        %439 = vmatpush.msra.mxu0 %v386
        %440 = vmatmul.f32.gmra.mxu0 %v420
        %v441 = vpop.f32.mrf.mxu0
        %v442 = vadd.f32 0.0, %v441
        %443 = vdwg.mxu0
        %444 = vmatpush.msra.mxu0 %v417
        %445 = vmatpush.msra.mxu0 %v416
        %446 = vmatpush.msra.mxu0 %v415
        %447 = vmatpush.msra.mxu0 %v414
        %448 = vmatpush.msra.mxu0 %v413
        %449 = vmatpush.msra.mxu0 %v412
        %450 = vmatpush.msra.mxu0 %v411
        %451 = vmatpush.msra.mxu0 %v410
        %452 = vmatpush.msra.mxu0 %v409
        %453 = vmatpush.msra.mxu0 %v408
        %454 = vmatpush.msra.mxu0 %v407
        %455 = vmatpush.msra.mxu0 %v406
        %456 = vmatpush.msra.mxu0 %v405
        %457 = vmatpush.msra.mxu0 %v404
        %458 = vmatpush.msra.mxu0 %v403
        %459 = vmatpush.msra.mxu0 %v402
        %460 = vmatmul.f32.gmra.mxu0 %v421
        %v461 = vpop.f32.mrf.mxu0
        %v462 = vadd.f32 %v442, %v461
        %463 = vdwg.mxu0
        %v464 = vld [vmem:[%s9] sm:$0xff]
        %v465 = vld [vmem:[%s9 + $0x8] sm:$0xff]
        %v466 = vld [vmem:[%s9 + $0x10] sm:$0xff]
        %v467 = vld [vmem:[%s9 + $0x18] sm:$0xff]
        %v468 = vld [vmem:[%s10] sm:$0xff]
        %v469 = vld [vmem:[%s10 + $0x8] sm:$0xff]
        %v470 = vld [vmem:[%s10 + $0x10] sm:$0xff]
        %v471 = vld [vmem:[%s10 + $0x18] sm:$0xff]
        %473 = vset.pattern.permute.xlu0 0
        %474 = vperm.xlu0 %473, %v468
        %v475 = vpop.permute.xlu0 %474
        %478 = vset.pattern.permute.xlu0 0
        %479 = vperm.xlu0 %478, %v469
        %v480 = vpop.permute.xlu0 %479
        %483 = vset.pattern.permute.xlu0 0
        %484 = vperm.xlu0 %483, %v470
        %v485 = vpop.permute.xlu0 %484
        %488 = vset.pattern.permute.xlu0 0
        %489 = vperm.xlu0 %488, %v471
        %v490 = vpop.permute.xlu0 %489
        %vm492 = vcmask 31744
        %v494 = vsel %vm492, %v464, 0
        %v497 = vsel %vm492, %v465, 0
        %v500 = vsel %vm492, %v466, 0
        %v503 = vsel %vm492, %v467, 0
        %vm505 = vcmask 1043456
        %v507 = vsel %vm505, %v462, 0
        %509 = vmatpush.msra.mxu0 0.0
        %510 = vmatpush.msra.mxu0 0.0
        %511 = vmatpush.msra.mxu0 0.0
        %512 = vmatpush.msra.mxu0 0.0
        %513 = vmatpush.msra.mxu0 0.0
        %514 = vmatpush.msra.mxu0 0.0
        %515 = vmatpush.msra.mxu0 0.0
        %516 = vmatpush.msra.mxu0 0.0
        %517 = vmatpush.msra.mxu0 0.0
        %518 = vmatpush.msra.mxu0 0.0
        %519 = vmatpush.msra.mxu0 0.0
        %520 = vmatpush.msra.mxu0 0.0
        %521 = vmatpush.msra.mxu0 0.0
        %522 = vmatpush.msra.mxu0 0.0
        %523 = vmatpush.msra.mxu0 0.0
        %524 = vmatpush.msra.mxu0 %v507
        %525 = vmatmul.f32.gmra.mxu0 %v494
        %v526 = vpop.f32.mrf.mxu0
        %v527 = vadd.f32 %v475, %v526
        %528 = vmatmul.f32.gmra.mxu0 %v497
        %v529 = vpop.f32.mrf.mxu0
        %v530 = vadd.f32 %v480, %v529
        %531 = vmatmul.f32.gmra.mxu0 %v500
        %v532 = vpop.f32.mrf.mxu0
        %v533 = vadd.f32 %v485, %v532
        %534 = vmatmul.f32.gmra.mxu0 %v503
        %v535 = vpop.f32.mrf.mxu0
        %v536 = vadd.f32 %v490, %v535
        %537 = vdwg.mxu0
        %538 = vst [vmem:[#allocation1] ss:$2 sm:$0xff] %v385
        %v539 = vld.sshfl [vmem:[#allocation1] sm:$0xff pattern:$0x75316420]
        %v540 = vld.sshfl [vmem:[#allocation1 + $0x8] sm:$0xff pattern:$0x75316420]
        %v543 = vsel %vm505, %v539, 0.0
        %v544 = vsel %vm505, %v540, 0.0
        %v545 = vadd.f32 %v543, %v544
        %546 = vadd.xlane.f32.xlu0 %v545
        %v547 = vpop.xlane.xlu0 %546
        %v548 = vrcp.pop 256.0
        %v549 = vmul.f32 256.0, %v548
        %v550 = vsub.f32 1.0, %v549
        %v551 = vmul.f32 %v548, %v550
        %v552 = vadd.f32 %v548, %v551
        %vm553 = vweird.f32 %v548
        %v554 = vsel %vm553, %v548, %v552
        %v555 = vmul.f32 %v547, %v554
        %v558 = vunpack.c.l.s4 839922192
        %v559 = vunpack.c.0.s8 %v558
        %v560 = vperm.slane %v555, %v559
        %v562 = vsub.f32 %v385, %v560
        %v563 = vmul.f32 %v562, %v562
        %565 = vst [vmem:[#allocation1] ss:$2 sm:$0xff] %v563
        %v566 = vld.sshfl [vmem:[#allocation1] sm:$0xff pattern:$0x75316420]
        %v567 = vld.sshfl [vmem:[#allocation1 + $0x8] sm:$0xff pattern:$0x75316420]
        %v570 = vsel %vm505, %v566, 0.0
        %v571 = vsel %vm505, %v567, 0.0
        %v572 = vadd.f32 %v570, %v571
        %573 = vadd.xlane.f32.xlu0 %v572
        %v574 = vpop.xlane.xlu0 %573
        %v575 = vmul.f32 %v574, %v554
        %v576 = vadd.f32 %v575, 1e-05
        %v577 = vrsqrt.pop %v576
        %v578 = vmul.f32 %v577, %v576
        %v579 = vmul.f32 %v578, %v577
        %v580 = vmul.f32 0.5, %v579
        %v581 = vsub.f32 1.5, %v580
        %v582 = vmul.f32 %v577, %v581
        %vm583 = vweird.f32 %v576
        %vm584 = vweird.f32 %v577
        %vm585 = vmor %vm583, %vm584
        %v586 = vsel %vm585, %v577, %v582
        %v589 = vunpack.c.l.s4 839922192
        %v590 = vunpack.c.0.s8 %v589
        %v591 = vperm.slane %v586, %v590
        %v593 = vmul.f32 %v562, %v591
        %v594 = vmax.f32 %v593, 0.0
        %v595 = vld [vmem:[%s3] sm:$0xff]
        %v596 = vld [vmem:[%s4] sm:$0xff]
        %598 = vset.pattern.permute.xlu0 0
        %599 = vperm.xlu0 %598, %v596
        %v600 = vpop.permute.xlu0 %599
        %603 = vst [vmem:[#allocation1] ss:$2 sm:$0xff] %v594
        %v604 = vld.sshfl [vmem:[#allocation1] sm:$0xff pattern:$0x75316420]
        %v605 = vld.sshfl [vmem:[#allocation1 + $0x8] sm:$0xff pattern:$0x75316420]
        %v607 = vsel %vm492, %v595, 0
        %v609 = vsel %vm505, %v604, 0
        %v611 = vsel %vm505, %v605, 0
        %613 = vmatpush.msra.mxu0 0.0
        %614 = vmatpush.msra.mxu0 0.0
        %615 = vmatpush.msra.mxu0 0.0
        %616 = vmatpush.msra.mxu0 0.0
        %617 = vmatpush.msra.mxu0 0.0
        %618 = vmatpush.msra.mxu0 0.0
        %619 = vmatpush.msra.mxu0 0.0
        %620 = vmatpush.msra.mxu0 0.0
        %621 = vmatpush.msra.mxu0 0.0
        %622 = vmatpush.msra.mxu0 0.0
        %623 = vmatpush.msra.mxu0 0.0
        %624 = vmatpush.msra.mxu0 0.0
        %625 = vmatpush.msra.mxu0 0.0
        %626 = vmatpush.msra.mxu0 0.0
        %627 = vmatpush.msra.mxu0 0.0
        %628 = vmatpush.msra.mxu0 %v609
        %629 = vmatmul.f32.gmra.mxu0 %v607
        %v630 = vpop.f32.mrf.mxu0
        %v631 = vadd.f32 %v600, %v630
        %632 = vdwg.mxu0
        %633 = vmatpush.msra.mxu0 0.0
        %634 = vmatpush.msra.mxu0 0.0
        %635 = vmatpush.msra.mxu0 0.0
        %636 = vmatpush.msra.mxu0 0.0
        %637 = vmatpush.msra.mxu0 0.0
        %638 = vmatpush.msra.mxu0 0.0
        %639 = vmatpush.msra.mxu0 0.0
        %640 = vmatpush.msra.mxu0 0.0
        %641 = vmatpush.msra.mxu0 0.0
        %642 = vmatpush.msra.mxu0 0.0
        %643 = vmatpush.msra.mxu0 0.0
        %644 = vmatpush.msra.mxu0 0.0
        %645 = vmatpush.msra.mxu0 0.0
        %646 = vmatpush.msra.mxu0 0.0
        %647 = vmatpush.msra.mxu0 0.0
        %648 = vmatpush.msra.mxu0 %v611
        %649 = vmatmul.f32.gmra.mxu0 %v607
        %v650 = vpop.f32.mrf.mxu0
        %v651 = vadd.f32 %v600, %v650
        %652 = vdwg.mxu0
        %v653 = vadd.f32 %v631, %v651
        %654 = vadd.xlane.f32.xlu0 %v653
        %v655 = vpop.xlane.xlu0 %654
        %v656 = vmul.f32 %v655, %v554
        %v657 = vsub.f32 %v631, %v656
        %v658 = vsub.f32 %v651, %v656
        %v659 = vmul.f32 %v657, %v657
        %v660 = vmul.f32 %v658, %v658
        %v661 = vadd.f32 %v659, %v660
        %662 = vadd.xlane.f32.xlu0 %v661
        %v663 = vpop.xlane.xlu0 %662
        %v664 = vmul.f32 %v663, %v554
        %v665 = vadd.f32 %v664, 1e-05
        %v666 = vrsqrt.pop %v665
        %v667 = vmul.f32 %v666, %v665
        %v668 = vmul.f32 %v667, %v666
        %v669 = vmul.f32 0.5, %v668
        %v670 = vsub.f32 1.5, %v669
        %v671 = vmul.f32 %v666, %v670
        %vm672 = vweird.f32 %v665
        %vm673 = vweird.f32 %v666
        %vm674 = vmor %vm672, %vm673
        %v675 = vsel %vm674, %v666, %v671
        %v676 = vmul.f32 %v657, %v675
        %v677 = vmul.f32 %v658, %v675
        %v678 = vmax.f32 %v676, 0.0
        %v679 = vmax.f32 %v677, 0.0
        %v680 = vld [vmem:[%s2] sm:$0xff]
        %v681 = vld [vmem:[%s2 + $0x8] sm:$0xff]
        %v682 = vld [vmem:[%s2 + $0x10] sm:$0xff]
        %v683 = vld [vmem:[%s2 + $0x18] sm:$0xff]
        %v684 = vld [vmem:[%s2 + $0x20] sm:$0xff]
        %v685 = vld [vmem:[%s2 + $0x28] sm:$0xff]
        %v686 = vld [vmem:[%s2 + $0x30] sm:$0xff]
        %v687 = vld [vmem:[%s2 + $0x38] sm:$0xff]
        %v688 = vld [vmem:[%s2 + $0x40] sm:$0xff]
        %v689 = vld [vmem:[%s2 + $0x48] sm:$0xff]
        %v690 = vld [vmem:[%s2 + $0x50] sm:$0xff]
        %v691 = vld [vmem:[%s2 + $0x58] sm:$0xff]
        %v692 = vld [vmem:[%s2 + $0x60] sm:$0xff]
        %v693 = vld [vmem:[%s2 + $0x68] sm:$0xff]
        %v694 = vld [vmem:[%s2 + $0x70] sm:$0xff]
        %v695 = vld [vmem:[%s2 + $0x78] sm:$0xff]
        %v696 = vld [vmem:[%s2 + $0x80] sm:$0xff]
        %v697 = vld [vmem:[%s2 + $0x88] sm:$0xff]
        %v698 = vld [vmem:[%s2 + $0x90] sm:$0xff]
        %v699 = vld [vmem:[%s2 + $0x98] sm:$0xff]
        %v700 = vld [vmem:[%s2 + $0xa0] sm:$0xff]
        %v701 = vld [vmem:[%s2 + $0xa8] sm:$0xff]
        %v702 = vld [vmem:[%s2 + $0xb0] sm:$0xff]
        %v703 = vld [vmem:[%s2 + $0xb8] sm:$0xff]
        %v704 = vld [vmem:[%s2 + $0xc0] sm:$0xff]
        %v705 = vld [vmem:[%s2 + $0xc8] sm:$0xff]
        %v706 = vld [vmem:[%s2 + $0xd0] sm:$0xff]
        %v707 = vld [vmem:[%s2 + $0xd8] sm:$0xff]
        %v708 = vld [vmem:[%s2 + $0xe0] sm:$0xff]
        %v709 = vld [vmem:[%s2 + $0xe8] sm:$0xff]
        %v710 = vld [vmem:[%s2 + $0xf0] sm:$0xff]
        %v711 = vld [vmem:[%s2 + $0xf8] sm:$0xff]
        %v712 = vld [vmem:[%s2 + $0x100] sm:$0xff]
        %v713 = vld [vmem:[%s2 + $0x108] sm:$0xff]
        %v714 = vld [vmem:[%s2 + $0x110] sm:$0xff]
        %v715 = vld [vmem:[%s2 + $0x118] sm:$0xff]
        %v716 = vld [vmem:[%s2 + $0x120] sm:$0xff]
        %v717 = vld [vmem:[%s2 + $0x128] sm:$0xff]
        %v718 = vld [vmem:[%s2 + $0x130] sm:$0xff]
        %v719 = vld [vmem:[%s2 + $0x138] sm:$0xff]
        %v720 = vld [vmem:[%s2 + $0x140] sm:$0xff]
        %v721 = vld [vmem:[%s2 + $0x148] sm:$0xff]
        %v722 = vld [vmem:[%s2 + $0x150] sm:$0xff]
        %v723 = vld [vmem:[%s2 + $0x158] sm:$0xff]
        %v724 = vld [vmem:[%s2 + $0x160] sm:$0xff]
        %v725 = vld [vmem:[%s2 + $0x168] sm:$0xff]
        %v726 = vld [vmem:[%s2 + $0x170] sm:$0xff]
        %v727 = vld [vmem:[%s2 + $0x178] sm:$0xff]
        %v728 = vld [vmem:[%s2 + $0x180] sm:$0xff]
        %v729 = vld [vmem:[%s2 + $0x188] sm:$0xff]
        %v730 = vld [vmem:[%s2 + $0x190] sm:$0xff]
        %v731 = vld [vmem:[%s2 + $0x198] sm:$0xff]
        %v732 = vld [vmem:[%s2 + $0x1a0] sm:$0xff]
        %v733 = vld [vmem:[%s2 + $0x1a8] sm:$0xff]
        %v734 = vld [vmem:[%s2 + $0x1b0] sm:$0xff]
        %v735 = vld [vmem:[%s2 + $0x1b8] sm:$0xff]
        %v736 = vld [vmem:[%s2 + $0x1c0] sm:$0xff]
        %v737 = vld [vmem:[%s2 + $0x1c8] sm:$0xff]
        %v738 = vld [vmem:[%s2 + $0x1d0] sm:$0xff]
        %v739 = vld [vmem:[%s2 + $0x1d8] sm:$0xff]
        %v740 = vld [vmem:[%s2 + $0x1e0] sm:$0xff]
        %v741 = vld [vmem:[%s2 + $0x1e8] sm:$0xff]
        %v742 = vld [vmem:[%s2 + $0x1f0] sm:$0xff]
        %v743 = vld [vmem:[%s2 + $0x1f8] sm:$0xff]
        %v744 = vld [vmem:[%s2 + $0x200] sm:$0xff]
        %v745 = vld [vmem:[%s2 + $0x208] sm:$0xff]
        %v746 = vld [vmem:[%s2 + $0x210] sm:$0xff]
        %v747 = vld [vmem:[%s2 + $0x218] sm:$0xff]
        %v748 = vld [vmem:[%s2 + $0x220] sm:$0xff]
        %v749 = vld [vmem:[%s2 + $0x228] sm:$0xff]
        %v750 = vld [vmem:[%s2 + $0x230] sm:$0xff]
        %v751 = vld [vmem:[%s2 + $0x238] sm:$0xff]
        %v752 = vld [vmem:[%s2 + $0x240] sm:$0xff]
        %v753 = vld [vmem:[%s2 + $0x248] sm:$0xff]
        %v754 = vld [vmem:[%s2 + $0x250] sm:$0xff]
        %v755 = vld [vmem:[%s2 + $0x258] sm:$0xff]
        %v756 = vld [vmem:[%s2 + $0x260] sm:$0xff]
        %v757 = vld [vmem:[%s2 + $0x268] sm:$0xff]
        %v758 = vld [vmem:[%s2 + $0x270] sm:$0xff]
        %v759 = vld [vmem:[%s2 + $0x278] sm:$0xff]
        %v760 = vld [vmem:[%s2 + $0x280] sm:$0xff]
        %v761 = vld [vmem:[%s2 + $0x288] sm:$0xff]
        %v762 = vld [vmem:[%s2 + $0x290] sm:$0xff]
        %v763 = vld [vmem:[%s2 + $0x298] sm:$0xff]
        %v764 = vld [vmem:[%s2 + $0x2a0] sm:$0xff]
        %v765 = vld [vmem:[%s2 + $0x2a8] sm:$0xff]
        %v766 = vld [vmem:[%s2 + $0x2b0] sm:$0xff]
        %v767 = vld [vmem:[%s2 + $0x2b8] sm:$0xff]
        %v768 = vld [vmem:[%s2 + $0x2c0] sm:$0xff]
        %v769 = vld [vmem:[%s2 + $0x2c8] sm:$0xff]
        %v770 = vld [vmem:[%s2 + $0x2d0] sm:$0xff]
        %v771 = vld [vmem:[%s2 + $0x2d8] sm:$0xff]
        %v772 = vld [vmem:[%s2 + $0x2e0] sm:$0xff]
        %v773 = vld [vmem:[%s2 + $0x2e8] sm:$0xff]
        %v774 = vld [vmem:[%s2 + $0x2f0] sm:$0xff]
        %v775 = vld [vmem:[%s2 + $0x2f8] sm:$0xff]
        %v776 = vld [vmem:[%s2 + $0x300] sm:$0xff]
        %v777 = vld [vmem:[%s2 + $0x308] sm:$0xff]
        %v778 = vld [vmem:[%s2 + $0x310] sm:$0xff]
        %v779 = vld [vmem:[%s2 + $0x318] sm:$0xff]
        %v780 = vld [vmem:[%s2 + $0x320] sm:$0xff]
        %v781 = vld [vmem:[%s2 + $0x328] sm:$0xff]
        %v782 = vld [vmem:[%s2 + $0x330] sm:$0xff]
        %v783 = vld [vmem:[%s2 + $0x338] sm:$0xff]
        %v784 = vld [vmem:[%s2 + $0x340] sm:$0xff]
        %v785 = vld [vmem:[%s2 + $0x348] sm:$0xff]
        %v786 = vld [vmem:[%s2 + $0x350] sm:$0xff]
        %v787 = vld [vmem:[%s2 + $0x358] sm:$0xff]
        %v788 = vld [vmem:[%s2 + $0x360] sm:$0xff]
        %v789 = vld [vmem:[%s2 + $0x368] sm:$0xff]
        %v790 = vld [vmem:[%s2 + $0x370] sm:$0xff]
        %v791 = vld [vmem:[%s2 + $0x378] sm:$0xff]
        %v792 = vld [vmem:[%s2 + $0x380] sm:$0xff]
        %v793 = vld [vmem:[%s2 + $0x388] sm:$0xff]
        %v794 = vld [vmem:[%s2 + $0x390] sm:$0xff]
        %v795 = vld [vmem:[%s2 + $0x398] sm:$0xff]
        %v796 = vld [vmem:[%s2 + $0x3a0] sm:$0xff]
        %v797 = vld [vmem:[%s2 + $0x3a8] sm:$0xff]
        %v798 = vld [vmem:[%s2 + $0x3b0] sm:$0xff]
        %v799 = vld [vmem:[%s2 + $0x3b8] sm:$0xff]
        %v800 = vld [vmem:[%s2 + $0x3c0] sm:$0xff]
        %v801 = vld [vmem:[%s2 + $0x3c8] sm:$0xff]
        %v802 = vld [vmem:[%s2 + $0x3d0] sm:$0xff]
        %v803 = vld [vmem:[%s2 + $0x3d8] sm:$0xff]
        %v804 = vld [vmem:[%s2 + $0x3e0] sm:$0xff]
        %v805 = vld [vmem:[%s2 + $0x3e8] sm:$0xff]
        %v806 = vld [vmem:[%s2 + $0x3f0] sm:$0xff]
        %v807 = vld [vmem:[%s2 + $0x3f8] sm:$0xff]
        %v808 = vld [vmem:[%s2 + $0x400] sm:$0xff]
        %v809 = vld [vmem:[%s2 + $0x408] sm:$0xff]
        %v810 = vld [vmem:[%s2 + $0x410] sm:$0xff]
        %v811 = vld [vmem:[%s2 + $0x418] sm:$0xff]
        %v812 = vld [vmem:[%s2 + $0x420] sm:$0xff]
        %v813 = vld [vmem:[%s2 + $0x428] sm:$0xff]
        %v814 = vld [vmem:[%s2 + $0x430] sm:$0xff]
        %v815 = vld [vmem:[%s2 + $0x438] sm:$0xff]
        %v816 = vld [vmem:[%s2 + $0x440] sm:$0xff]
        %v817 = vld [vmem:[%s2 + $0x448] sm:$0xff]
        %v818 = vld [vmem:[%s2 + $0x450] sm:$0xff]
        %v819 = vld [vmem:[%s2 + $0x458] sm:$0xff]
        %v820 = vld [vmem:[%s2 + $0x460] sm:$0xff]
        %v821 = vld [vmem:[%s2 + $0x468] sm:$0xff]
        %v822 = vld [vmem:[%s2 + $0x470] sm:$0xff]
        %v823 = vld [vmem:[%s2 + $0x478] sm:$0xff]
        %v824 = vld [vmem:[%s2 + $0x480] sm:$0xff]
        %v825 = vld [vmem:[%s2 + $0x488] sm:$0xff]
        %v826 = vld [vmem:[%s2 + $0x490] sm:$0xff]
        %v827 = vld [vmem:[%s2 + $0x498] sm:$0xff]
        %v828 = vld [vmem:[%s2 + $0x4a0] sm:$0xff]
        %v829 = vld [vmem:[%s2 + $0x4a8] sm:$0xff]
        %v830 = vld [vmem:[%s2 + $0x4b0] sm:$0xff]
        %v831 = vld [vmem:[%s2 + $0x4b8] sm:$0xff]
        %v832 = vld [vmem:[%s2 + $0x4c0] sm:$0xff]
        %v833 = vld [vmem:[%s2 + $0x4c8] sm:$0xff]
        %v834 = vld [vmem:[%s2 + $0x4d0] sm:$0xff]
        %v835 = vld [vmem:[%s2 + $0x4d8] sm:$0xff]
        %v836 = vld [vmem:[%s2 + $0x4e0] sm:$0xff]
        %v837 = vld [vmem:[%s2 + $0x4e8] sm:$0xff]
        %v838 = vld [vmem:[%s2 + $0x4f0] sm:$0xff]
        %v839 = vld [vmem:[%s2 + $0x4f8] sm:$0xff]
        %840 = vmatpush.msra.mxu0 %v755
        %841 = vmatpush.msra.mxu0 %v750
        %842 = vmatpush.msra.mxu0 %v745
        %843 = vmatpush.msra.mxu0 %v740
        %844 = vmatpush.msra.mxu0 %v735
        %845 = vmatpush.msra.mxu0 %v730
        %846 = vmatpush.msra.mxu0 %v725
        %847 = vmatpush.msra.mxu0 %v720
        %848 = vmatpush.msra.mxu0 %v715
        %849 = vmatpush.msra.mxu0 %v710
        %850 = vmatpush.msra.mxu0 %v705
        %851 = vmatpush.msra.mxu0 %v700
        %852 = vmatpush.msra.mxu0 %v695
        %853 = vmatpush.msra.mxu0 %v690
        %854 = vmatpush.msra.mxu0 %v685
        %855 = vmatpush.msra.mxu0 %v680
        %856 = vmatmul.f32.gmra.mxu0 %v678
        %v857 = vpop.f32.mrf.mxu0
        %v858 = vadd.f32 0.0, %v857
        %859 = vdwg.mxu0
        %860 = vmatpush.msra.mxu0 %v835
        %861 = vmatpush.msra.mxu0 %v830
        %862 = vmatpush.msra.mxu0 %v825
        %863 = vmatpush.msra.mxu0 %v820
        %864 = vmatpush.msra.mxu0 %v815
        %865 = vmatpush.msra.mxu0 %v810
        %866 = vmatpush.msra.mxu0 %v805
        %867 = vmatpush.msra.mxu0 %v800
        %868 = vmatpush.msra.mxu0 %v795
        %869 = vmatpush.msra.mxu0 %v790
        %870 = vmatpush.msra.mxu0 %v785
        %871 = vmatpush.msra.mxu0 %v780
        %872 = vmatpush.msra.mxu0 %v775
        %873 = vmatpush.msra.mxu0 %v770
        %874 = vmatpush.msra.mxu0 %v765
        %875 = vmatpush.msra.mxu0 %v760
        %876 = vmatmul.f32.gmra.mxu0 %v679
        %v877 = vpop.f32.mrf.mxu0
        %v878 = vadd.f32 %v858, %v877
        %879 = vdwg.mxu0
        %880 = vmatpush.msra.mxu0 %v756
        %881 = vmatpush.msra.mxu0 %v751
        %882 = vmatpush.msra.mxu0 %v746
        %883 = vmatpush.msra.mxu0 %v741
        %884 = vmatpush.msra.mxu0 %v736
        %885 = vmatpush.msra.mxu0 %v731
        %886 = vmatpush.msra.mxu0 %v726
        %887 = vmatpush.msra.mxu0 %v721
        %888 = vmatpush.msra.mxu0 %v716
        %889 = vmatpush.msra.mxu0 %v711
        %890 = vmatpush.msra.mxu0 %v706
        %891 = vmatpush.msra.mxu0 %v701
        %892 = vmatpush.msra.mxu0 %v696
        %893 = vmatpush.msra.mxu0 %v691
        %894 = vmatpush.msra.mxu0 %v686
        %895 = vmatpush.msra.mxu0 %v681
        %896 = vmatmul.f32.gmra.mxu0 %v678
        %v897 = vpop.f32.mrf.mxu0
        %v898 = vadd.f32 0.0, %v897
        %899 = vdwg.mxu0
        %900 = vmatpush.msra.mxu0 %v836
        %901 = vmatpush.msra.mxu0 %v831
        %902 = vmatpush.msra.mxu0 %v826
        %903 = vmatpush.msra.mxu0 %v821
        %904 = vmatpush.msra.mxu0 %v816
        %905 = vmatpush.msra.mxu0 %v811
        %906 = vmatpush.msra.mxu0 %v806
        %907 = vmatpush.msra.mxu0 %v801
        %908 = vmatpush.msra.mxu0 %v796
        %909 = vmatpush.msra.mxu0 %v791
        %910 = vmatpush.msra.mxu0 %v786
        %911 = vmatpush.msra.mxu0 %v781
        %912 = vmatpush.msra.mxu0 %v776
        %913 = vmatpush.msra.mxu0 %v771
        %914 = vmatpush.msra.mxu0 %v766
        %915 = vmatpush.msra.mxu0 %v761
        %916 = vmatmul.f32.gmra.mxu0 %v679
        %v917 = vpop.f32.mrf.mxu0
        %v918 = vadd.f32 %v898, %v917
        %919 = vdwg.mxu0
        %920 = vmatpush.msra.mxu0 %v757
        %921 = vmatpush.msra.mxu0 %v752
        %922 = vmatpush.msra.mxu0 %v747
        %923 = vmatpush.msra.mxu0 %v742
        %924 = vmatpush.msra.mxu0 %v737
        %925 = vmatpush.msra.mxu0 %v732
        %926 = vmatpush.msra.mxu0 %v727
        %927 = vmatpush.msra.mxu0 %v722
        %928 = vmatpush.msra.mxu0 %v717
        %929 = vmatpush.msra.mxu0 %v712
        %930 = vmatpush.msra.mxu0 %v707
        %931 = vmatpush.msra.mxu0 %v702
        %932 = vmatpush.msra.mxu0 %v697
        %933 = vmatpush.msra.mxu0 %v692
        %934 = vmatpush.msra.mxu0 %v687
        %935 = vmatpush.msra.mxu0 %v682
        %936 = vmatmul.f32.gmra.mxu0 %v678
        %v937 = vpop.f32.mrf.mxu0
        %v938 = vadd.f32 0.0, %v937
        %939 = vdwg.mxu0
        %940 = vmatpush.msra.mxu0 %v837
        %941 = vmatpush.msra.mxu0 %v832
        %942 = vmatpush.msra.mxu0 %v827
        %943 = vmatpush.msra.mxu0 %v822
        %944 = vmatpush.msra.mxu0 %v817
        %945 = vmatpush.msra.mxu0 %v812
        %946 = vmatpush.msra.mxu0 %v807
        %947 = vmatpush.msra.mxu0 %v802
        %948 = vmatpush.msra.mxu0 %v797
        %949 = vmatpush.msra.mxu0 %v792
        %950 = vmatpush.msra.mxu0 %v787
        %951 = vmatpush.msra.mxu0 %v782
        %952 = vmatpush.msra.mxu0 %v777
        %953 = vmatpush.msra.mxu0 %v772
        %954 = vmatpush.msra.mxu0 %v767
        %955 = vmatpush.msra.mxu0 %v762
        %956 = vmatmul.f32.gmra.mxu0 %v679
        %v957 = vpop.f32.mrf.mxu0
        %v958 = vadd.f32 %v938, %v957
        %959 = vdwg.mxu0
        %960 = vmatpush.msra.mxu0 %v758
        %961 = vmatpush.msra.mxu0 %v753
        %962 = vmatpush.msra.mxu0 %v748
        %963 = vmatpush.msra.mxu0 %v743
        %964 = vmatpush.msra.mxu0 %v738
        %965 = vmatpush.msra.mxu0 %v733
        %966 = vmatpush.msra.mxu0 %v728
        %967 = vmatpush.msra.mxu0 %v723
        %968 = vmatpush.msra.mxu0 %v718
        %969 = vmatpush.msra.mxu0 %v713
        %970 = vmatpush.msra.mxu0 %v708
        %971 = vmatpush.msra.mxu0 %v703
        %972 = vmatpush.msra.mxu0 %v698
        %973 = vmatpush.msra.mxu0 %v693
        %974 = vmatpush.msra.mxu0 %v688
        %975 = vmatpush.msra.mxu0 %v683
        %976 = vmatmul.f32.gmra.mxu0 %v678
        %v977 = vpop.f32.mrf.mxu0
        %v978 = vadd.f32 0.0, %v977
        %979 = vdwg.mxu0
        %980 = vmatpush.msra.mxu0 %v838
        %981 = vmatpush.msra.mxu0 %v833
        %982 = vmatpush.msra.mxu0 %v828
        %983 = vmatpush.msra.mxu0 %v823
        %984 = vmatpush.msra.mxu0 %v818
        %985 = vmatpush.msra.mxu0 %v813
        %986 = vmatpush.msra.mxu0 %v808
        %987 = vmatpush.msra.mxu0 %v803
        %988 = vmatpush.msra.mxu0 %v798
        %989 = vmatpush.msra.mxu0 %v793
        %990 = vmatpush.msra.mxu0 %v788
        %991 = vmatpush.msra.mxu0 %v783
        %992 = vmatpush.msra.mxu0 %v778
        %993 = vmatpush.msra.mxu0 %v773
        %994 = vmatpush.msra.mxu0 %v768
        %995 = vmatpush.msra.mxu0 %v763
        %996 = vmatmul.f32.gmra.mxu0 %v679
        %v997 = vpop.f32.mrf.mxu0
        %v998 = vadd.f32 %v978, %v997
        %999 = vdwg.mxu0
        %1000 = vmatpush.msra.mxu0 %v759
        %1001 = vmatpush.msra.mxu0 %v754
        %1002 = vmatpush.msra.mxu0 %v749
        %1003 = vmatpush.msra.mxu0 %v744
        %1004 = vmatpush.msra.mxu0 %v739
        %1005 = vmatpush.msra.mxu0 %v734
        %1006 = vmatpush.msra.mxu0 %v729
        %1007 = vmatpush.msra.mxu0 %v724
        %1008 = vmatpush.msra.mxu0 %v719
        %1009 = vmatpush.msra.mxu0 %v714
        %1010 = vmatpush.msra.mxu0 %v709
        %1011 = vmatpush.msra.mxu0 %v704
        %1012 = vmatpush.msra.mxu0 %v699
        %1013 = vmatpush.msra.mxu0 %v694
        %1014 = vmatpush.msra.mxu0 %v689
        %1015 = vmatpush.msra.mxu0 %v684
        %1016 = vmatmul.f32.gmra.mxu0 %v678
        %v1017 = vpop.f32.mrf.mxu0
        %v1018 = vadd.f32 0.0, %v1017
        %1019 = vdwg.mxu0
        %1020 = vmatpush.msra.mxu0 %v839
        %1021 = vmatpush.msra.mxu0 %v834
        %1022 = vmatpush.msra.mxu0 %v829
        %1023 = vmatpush.msra.mxu0 %v824
        %1024 = vmatpush.msra.mxu0 %v819
        %1025 = vmatpush.msra.mxu0 %v814
        %1026 = vmatpush.msra.mxu0 %v809
        %1027 = vmatpush.msra.mxu0 %v804
        %1028 = vmatpush.msra.mxu0 %v799
        %1029 = vmatpush.msra.mxu0 %v794
        %1030 = vmatpush.msra.mxu0 %v789
        %1031 = vmatpush.msra.mxu0 %v784
        %1032 = vmatpush.msra.mxu0 %v779
        %1033 = vmatpush.msra.mxu0 %v774
        %1034 = vmatpush.msra.mxu0 %v769
        %1035 = vmatpush.msra.mxu0 %v764
        %1036 = vmatmul.f32.gmra.mxu0 %v679
        %v1037 = vpop.f32.mrf.mxu0
        %v1038 = vadd.f32 %v1018, %v1037
        %1039 = vdwg.mxu0
        %1041 = vrot.lane.b32.xlu0 %v878, 64
        %v1042 = vpop.permute.xlu0 %1041
        %1045 = vrot.lane.b32.xlu0 %v918, 64
        %v1046 = vpop.permute.xlu0 %1045
        %1049 = vrot.lane.b32.xlu0 %v958, 64
        %v1050 = vpop.permute.xlu0 %1049
        %1053 = vrot.lane.b32.xlu0 %v998, 64
        %v1054 = vpop.permute.xlu0 %1053
        %v1056 = vld [vmem:[%s5] sm:$0xff]
        %v1057 = vld [vmem:[%s6] sm:$0xff]
        %1059 = vset.pattern.permute.xlu0 0
        %1060 = vperm.xlu0 %1059, %v1057
        %v1061 = vpop.permute.xlu0 %1060
        %vm1063 = vcmask 588800
        %v1065 = vsel %vm1063, %v1056, 0
        %1067 = vmatpush.msra.mxu0 0.0
        %1068 = vmatpush.msra.mxu0 0.0
        %1069 = vmatpush.msra.mxu0 0.0
        %1070 = vmatpush.msra.mxu0 0.0
        %1071 = vmatpush.msra.mxu0 0.0
        %1072 = vmatpush.msra.mxu0 0.0
        %1073 = vmatpush.msra.mxu0 0.0
        %1074 = vmatpush.msra.mxu0 %v1038
        %1075 = vmatpush.msra.mxu0 %v1054
        %1076 = vmatpush.msra.mxu0 %v998
        %1077 = vmatpush.msra.mxu0 %v1050
        %1078 = vmatpush.msra.mxu0 %v958
        %1079 = vmatpush.msra.mxu0 %v1046
        %1080 = vmatpush.msra.mxu0 %v918
        %1081 = vmatpush.msra.mxu0 %v1042
        %1082 = vmatpush.msra.mxu0 %v878
        %1083 = vmatmul.f32.gmra.mxu0 %v1065
        %v1084 = vpop.f32.mrf.mxu0
        %v1085 = vadd.f32 %v1061, %v1084
        %1086 = vdwg.mxu0
        %vm1087 = vcmask 523264
        %v1088 = vsel %vm1087, %v1085, 0.0
        %1089 = vadd.xlane.f32.xlu0 %v1088
        %v1090 = vpop.xlane.xlu0 %1089
        %v1091 = vrcp.pop 64.0
        %v1092 = vmul.f32 64.0, %v1091
        %v1093 = vsub.f32 1.0, %v1092
        %v1094 = vmul.f32 %v1091, %v1093
        %v1095 = vadd.f32 %v1091, %v1094
        %vm1096 = vweird.f32 %v1091
        %v1097 = vsel %vm1096, %v1091, %v1095
        %v1098 = vmul.f32 %v1090, %v1097
        %v1099 = vsub.f32 %v1085, %v1098
        %v1100 = vmul.f32 %v1099, %v1099
        %v1101 = vsel %vm1087, %v1100, 0.0
        %1102 = vadd.xlane.f32.xlu0 %v1101
        %v1103 = vpop.xlane.xlu0 %1102
        %v1104 = vmul.f32 %v1103, %v1097
        %v1105 = vadd.f32 %v1104, 1e-05
        %v1106 = vrsqrt.pop %v1105
        %v1107 = vmul.f32 %v1106, %v1105
        %v1108 = vmul.f32 %v1107, %v1106
        %v1109 = vmul.f32 0.5, %v1108
        %v1110 = vsub.f32 1.5, %v1109
        %v1111 = vmul.f32 %v1106, %v1110
        %vm1112 = vweird.f32 %v1105
        %vm1113 = vweird.f32 %v1106
        %vm1114 = vmor %vm1112, %vm1113
        %v1115 = vsel %vm1114, %v1106, %v1111
        %v1116 = vmul.f32 %v1099, %v1115
        %v1117 = vmax.f32 %v1116, 0.0
        %v1118 = vld [vmem:[%s7] sm:$0xff]
        %v1119 = vld [vmem:[%s7 + $0x8] sm:$0xff]
        %v1120 = vld [vmem:[%s7 + $0x10] sm:$0xff]
        %v1121 = vld [vmem:[%s7 + $0x18] sm:$0xff]
        %v1122 = vld [vmem:[%s8] sm:$0xff]
        %v1123 = vld [vmem:[%s8 + $0x8] sm:$0xff]
        %v1124 = vld [vmem:[%s8 + $0x10] sm:$0xff]
        %v1125 = vld [vmem:[%s8 + $0x18] sm:$0xff]
        %1127 = vset.pattern.permute.xlu0 0
        %1128 = vperm.xlu0 %1127, %v1122
        %v1129 = vpop.permute.xlu0 %1128
        %1132 = vset.pattern.permute.xlu0 0
        %1133 = vperm.xlu0 %1132, %v1123
        %v1134 = vpop.permute.xlu0 %1133
        %1137 = vset.pattern.permute.xlu0 0
        %1138 = vperm.xlu0 %1137, %v1124
        %v1139 = vpop.permute.xlu0 %1138
        %1142 = vset.pattern.permute.xlu0 0
        %1143 = vperm.xlu0 %1142, %v1125
        %v1144 = vpop.permute.xlu0 %1143
        %vm1146 = vcmask 64512
        %v1148 = vsel %vm1146, %v1118, 0
        %v1151 = vsel %vm1146, %v1119, 0
        %v1154 = vsel %vm1146, %v1120, 0
        %v1157 = vsel %vm1146, %v1121, 0
        %1159 = vmatpush.msra.mxu0 0.0
        %1160 = vmatpush.msra.mxu0 0.0
        %1161 = vmatpush.msra.mxu0 0.0
        %1162 = vmatpush.msra.mxu0 0.0
        %1163 = vmatpush.msra.mxu0 0.0
        %1164 = vmatpush.msra.mxu0 0.0
        %1165 = vmatpush.msra.mxu0 0.0
        %1166 = vmatpush.msra.mxu0 0.0
        %1167 = vmatpush.msra.mxu0 0.0
        %1168 = vmatpush.msra.mxu0 0.0
        %1169 = vmatpush.msra.mxu0 0.0
        %1170 = vmatpush.msra.mxu0 0.0
        %1171 = vmatpush.msra.mxu0 0.0
        %1172 = vmatpush.msra.mxu0 0.0
        %1173 = vmatpush.msra.mxu0 0.0
        %1174 = vmatpush.msra.mxu0 %v1117
        %1175 = vmatmul.f32.gmra.mxu0 %v1148
        %v1176 = vpop.f32.mrf.mxu0
        %v1177 = vadd.f32 %v1129, %v1176
        %1178 = vmatmul.f32.gmra.mxu0 %v1151
        %v1179 = vpop.f32.mrf.mxu0
        %v1180 = vadd.f32 %v1134, %v1179
        %1181 = vmatmul.f32.gmra.mxu0 %v1154
        %v1182 = vpop.f32.mrf.mxu0
        %v1183 = vadd.f32 %v1139, %v1182
        %1184 = vmatmul.f32.gmra.mxu0 %v1157
        %v1185 = vpop.f32.mrf.mxu0
        %v1186 = vadd.f32 %v1144, %v1185
        %1187 = vdwg.mxu0
        %v1188 = vadd.f32 %v1177, %v527
        %v1189 = vadd.f32 %v1180, %v530
        %v1190 = vadd.f32 %v1183, %v533
        %v1191 = vadd.f32 %v1186, %v536
        %1194 = vrot.lane.b32.xlu0 %v1190, 64
        %v1195 = vpop.permute.xlu0 %1194
        %1196 = vrot.lane.b32.xlu0 %v1191, 64
        %v1197 = vpop.permute.xlu0 %1196
        %v1200 = vsel %vm1087, %v1188, %v1195
        %v1201 = vsel %vm1087, %v1189, %v1197
        %1202 = vst [vmem:[%s379] sm:$0xff] %v1200
        %1203 = vst [vmem:[%s379 + $0x8] sm:$0xff] %v1201
        %s1204 = sand.u32 %s269, 1
        %s1205 = scalar_lea.sflag [#allocation3], %s1204
        %s1206 = sand.u32 %s269, 1
        %s1207 = smul.addr %s1206, 16
        %s1208 = scalar_lea.vmem [#allocation2], %s1207
        // Predicated region
        $region65: #{tpu_custom_call.1} parent=63 // pred_check
          %p1209 = pneg %p279
        $region66: #{tpu_custom_call.1} parent=63 // pred_check_branch
          %1211 = sbr.rel (%p1209) target = $region68
        $region67: #{tpu_custom_call.1} parent=63 // pred_region
          %1213 = vsyncadd %s1205, 0
          %s1214 = smul.addr %s25, 2
          %s1215 = smul.addr %s1214, 8
          %s1216 = scalar_lea.hbm %s11, %s1215
          %s1217 = sshll.u32 %s1208, 4
          %s1218 = int_to_ptr.vmem [resolvable:$true] %s1217
          %s1219 = sshll.u32 %s1216, 4
          %s1220 = int_to_ptr.hbm [resolvable:$true] %s1219
          %1225 = dma.vmem_to_hbm [thread:$0]  %s1218, 256, %s1220, %s1205, 128, 128, 8
        $region68: #{tpu_custom_call.1} parent=63 // pred_fallthru
          _
      $region64: #{tpu_custom_call.1} parent=5 // pred_fallthru
        _
      %p1226 = scmp.le.s32.totalorder 2, %s20
      // Predicated region
      $region69: #{tpu_custom_call.1} parent=5 // pred_check
        %p1227 = pneg %p1226
      $region70: #{tpu_custom_call.1} parent=5 // pred_check_branch
        %1229 = sbr.rel (%p1227) target = $region72
      $region71: #{tpu_custom_call.1} parent=5 // pred_region
        %s1230 = ssub.s32 %s20, 2
        // Predicated region
        $region73: #{tpu_custom_call.1} parent=71 // pred_check
          %p1231 = pneg %p285
        $region74: #{tpu_custom_call.1} parent=71 // pred_check_branch
          %1233 = sbr.rel (%p1231) target = $region76
        $region75: #{tpu_custom_call.1} parent=71 // pred_region
          %s1234 = sand.u32 %s270, 1
          %s1235 = scalar_lea.sflag [#allocation3], %s1234
          %s1236 = sand.u32 %s270, 1
          %s1237 = smul.addr %s1236, 16
          %s1238 = scalar_lea.vmem [#allocation2], %s1237
          %1240 = dma.done %s1235, 256
        $region76: #{tpu_custom_call.1} parent=71 // pred_fallthru
          _
      $region72: #{tpu_custom_call.1} parent=5 // pred_fallthru
        _
    $region6: #{tpu_custom_call.1} parent=1 // loop_footer
      %s24 = sadd.s32 1, %s20
    $region7: #{tpu_custom_call.1} parent=1 // loop_footer_branch
      %19 = sbr.rel target = $region3
    $region8: #{tpu_custom_call.1} parent=1 // loop_exit
      _
    %1241 = vsyncpa [#allocation3], 1
    %s1242 = scalar_lea.sflag [#allocation3], 1
    %1243 = vsyncpa %s1242, 1

</llo_original>
